<compile_context>
chip_gen: v5e
topology: v5e:2x2
jax: 0.10.0
libtpu: 0.0.40
codegen_flags: <defaults>
</compile_context>

<pallas_src>
import functools

import jax
import jax.numpy as jnp
import numpy as np
from jax.experimental import pallas as pl
from jax.experimental.pallas import tpu as pltpu


# ------------------------------ kernel ---------------------------------------
def _gffn_kernel(x_ref, w1u_ref, dwu_ref, w1l_ref, dwl_ref, wo_ref, o_ref,
                 *, offs, c_dim):
    """One batch element per grid step.

    x_ref : (C, P) VMEM, lane-dense flattened zero-padded grid
    w1u_ref / w1l_ref / wo_ref : (C*C,) SMEM, flat [ci*C + co] 1x1 weights
    dwu_ref / dwl_ref          : (9*C,) SMEM, flat [tap*C + c] depthwise weights
    o_ref : (C, P) VMEM
    """
    p = o_ref.shape[-1]
    k_center = offs.index(0)

    x = x_ref[...]                                   # (C, P) f32
    rows = [x[ci:ci + 1, :] for ci in range(c_dim)]  # (1, P) each

    def pointwise(w_ref, co):
        # 1x1 conv, one output channel: sum_ci w[ci, co] * x[ci, :]
        acc = rows[0] * w_ref[co]
        for ci in range(1, c_dim):
            acc = acc + rows[ci] * w_ref[ci * c_dim + co]
        return acc

    def dwconv3x3(h, dw_ref, c):
        # 3x3 depthwise conv for channel c on the flattened zero-padded grid.
        # Taps are static lane rotations (pltpu.roll -> XLU slot).  Interior
        # outputs never observe the wrap-around because the grid carries a
        # 1-pixel zero border (lane padding sits past the last padded row).
        acc = h * dw_ref[k_center * c_dim + c]       # center tap, no shift
        for k, off in enumerate(offs):
            if off == 0:
                continue
            shifted = pltpu.roll(h, shift=(-off) % p, axis=1)
            acc = acc + shifted * dw_ref[k * c_dim + c]
        return acc

    gated = []
    for co in range(c_dim):
        u = dwconv3x3(pointwise(w1u_ref, co), dwu_ref, co)
        l = dwconv3x3(pointwise(w1l_ref, co), dwl_ref, co)
        l = l * (1.0 / (1.0 + jnp.exp(-l)))          # SiLU (exp on EUP slot)
        gated.append(u * l)

    # final 1x1 mixing conv; per-channel stores are full-lane-width (unmasked)
    for co in range(c_dim):
        acc = gated[0] * wo_ref[co]
        for ci in range(1, c_dim):
            acc = acc + gated[ci] * wo_ref[ci * c_dim + co]
        o_ref[co:co + 1, :] = acc.astype(o_ref.dtype)


# --------------------------------- wrapper -----------------------------------
@jax.jit
def gffn_forward(x, w1_up, dw_up, w1_low, dw_low, w_out):
    """GFFN forward in NHWC.

    x      : (B, H, W, C) float32
    w1_up  : (C_in, C_out)  = torch net_up[0].weight[:, :, 0, 0].T
    dw_up  : (3, 3, C)      = torch net_up[1].weight[c, 0, dy, dx] -> [dy, dx, c]
    w1_low : (C_in, C_out)
    dw_low : (3, 3, C)
    w_out  : (C_in, C_out)  = torch toOut.weight[:, :, 0, 0].T
    """
    B, H, W, C = x.shape
    Hp, Wp = H + 2, W + 2
    P = pl.cdiv(Hp * Wp, 128) * 128        # lane-dense flattened padded grid

    # --- layout plumbing (plain XLA glue, outside the kernel) ----------------
    xt = jnp.transpose(x, (0, 3, 1, 2))                        # (B, C, H, W)
    xt = jnp.pad(xt, ((0, 0), (0, 0), (1, 1), (1, 1)))         # zero border
    xt = xt.reshape(B, C, Hp * Wp)
    xt = jnp.pad(xt, ((0, 0), (0, 0), (0, P - Hp * Wp)))       # (B, C, P)

    # Tiny weights -> flat f32 vectors in SMEM (scalar reads in-kernel; no
    # lane-broadcast weight arrays, no weight DMA scaling with H*W).
    w1u = w1_up.reshape(C * C)
    w1l = w1_low.reshape(C * C)
    wo = w_out.reshape(C * C)
    dwu = dw_up.reshape(9 * C)
    dwl = dw_low.reshape(9 * C)

    # static flat-grid offsets of the 3x3 taps, same (dy, dx) order as the
    # (9*C,) flatten above
    offs = tuple((dy - 1) * Wp + (dx - 1) for dy in range(3) for dx in range(3))

    # TODO(synk): for very large H*W, add a lane-tile grid axis over P with a
    # (Wp+1)-wide halo instead of holding the whole padded image per batch.
    smem_spec = pl.BlockSpec(memory_space=pltpu.MemorySpace.SMEM)

    flops = B * (3 * 2 * C * C * P + 2 * 9 * 2 * C * P + 6 * C * P)
    bytes_accessed = 4 * (xt.size + B * C * P + 3 * C * C + 2 * 9 * C)

    out_flat = pl.pallas_call(
        functools.partial(_gffn_kernel, offs=offs, c_dim=C),
        out_shape=jax.ShapeDtypeStruct((B, C, P), x.dtype),
        grid=(B,),
        in_specs=[
            pl.BlockSpec((None, C, P), lambda b: (b, 0, 0)),   # x (per batch)
            smem_spec,                                         # w1_up  (C*C,)
            smem_spec,                                         # dw_up  (9*C,)
            smem_spec,                                         # w1_low (C*C,)
            smem_spec,                                         # dw_low (9*C,)
            smem_spec,                                         # w_out  (C*C,)
        ],
        out_specs=pl.BlockSpec((None, C, P), lambda b: (b, 0, 0)),
        compiler_params=pltpu.CompilerParams(
            dimension_semantics=("parallel",),      # batches across TCs (v7x)
            vmem_limit_bytes=32 * 1024 * 1024),
        cost_estimate=pl.CostEstimate(
            flops=flops, transcendentals=B * C * P,
            bytes_accessed=bytes_accessed),
    )(xt, w1u, dwu, w1l, dwl, wo)

    # drop lane padding + zero border, back to NHWC
    out = out_flat[:, :, :Hp * Wp].reshape(B, C, Hp, Wp)[:, :, 1:H + 1, 1:W + 1]
    return jnp.transpose(out, (0, 2, 3, 1))


# ---------------------------- pure-JAX reference ------------------------------
def gffn_reference(x, w1_up, dw_up, w1_low, dw_low, w_out):
    H, W = x.shape[1], x.shape[2]
    hi = jax.lax.Precision.HIGHEST

    def branch(w1, dw):
        h = jnp.einsum("bhwc,cd->bhwd", x, w1, precision=hi)
        hp = jnp.pad(h, ((0, 0), (1, 1), (1, 1), (0, 0)))
        acc = jnp.zeros_like(h)
        for dy in range(3):
            for dx in range(3):
                acc = acc + hp[:, dy:dy + H, dx:dx + W, :] * dw[dy, dx, :]
        return acc

    up = branch(w1_up, dw_up)
    low = branch(w1_low, dw_low)
    low = low * jax.nn.sigmoid(low)
    return jnp.einsum("bhwd,dc->bhwc", up * low, w_out, precision=hi)


# ----------------------------------- main -------------------------------------
if __name__ == "__main__":
    B, H, W, dim = 2, 16, 16, 4

    key = jax.random.PRNGKey(0)
    kx, k1, k2, k3, k4, k5 = jax.random.split(key, 6)

    x = jax.random.normal(kx, (B, H, W, dim), dtype=jnp.float32)

    # Weight conventions vs. the PyTorch module (all convs are bias=False):
    #   nn.Conv2d(dim, dim, 1) weight (co, ci, 1, 1) -> here (ci, co)
    #   depthwise Conv2d weight (c, 1, 3, 3)         -> here (3, 3, c)
    w1_up = jax.random.normal(k1, (dim, dim), dtype=jnp.float32) * 0.3
    dw_up = jax.random.normal(k2, (3, 3, dim), dtype=jnp.float32) * 0.3
    w1_low = jax.random.normal(k3, (dim, dim), dtype=jnp.float32) * 0.3
    dw_low = jax.random.normal(k4, (3, 3, dim), dtype=jnp.float32) * 0.3
    w_out = jax.random.normal(k5, (dim, dim), dtype=jnp.float32) * 0.3

    out = jax.block_until_ready(
        gffn_forward(x, w1_up, dw_up, w1_low, dw_low, w_out))
    ref = gffn_reference(x, w1_up, dw_up, w1_low, dw_low, w_out)

    np.testing.assert_allclose(np.asarray(out), np.asarray(ref),
                               rtol=1e-4, atol=1e-4)
    print("KERNEL_OK")
</pallas_src>

<mosaic_0001>
module attributes {stable_mosaic.version = 11 : i64} {
  func.func @_gffn_kernel(%arg0: i32, %arg1: memref<1x4x384xf32, #tpu.memory_space<vmem>>, %arg2: memref<16xf32, #tpu.memory_space<smem>>, %arg3: memref<36xf32, #tpu.memory_space<smem>>, %arg4: memref<16xf32, #tpu.memory_space<smem>>, %arg5: memref<36xf32, #tpu.memory_space<smem>>, %arg6: memref<16xf32, #tpu.memory_space<smem>>, %arg7: memref<1x4x384xf32, #tpu.memory_space<vmem>>) attributes {dimension_semantics = [#tpu.dimension_semantics<parallel>], iteration_bounds = array<i64: 2>, scalar_prefetch = 0 : i64, scratch_operands = 0 : i64, tpu.core_type = #tpu.core_type<tc>, window_params = [{transform_indices = @transform_0, window_bounds = array<i64: 1, 4, 384>}, {transform_indices = @transform_1, window_bounds = array<i64: 16>}, {transform_indices = @transform_2, window_bounds = array<i64: 36>}, {transform_indices = @transform_3, window_bounds = array<i64: 16>}, {transform_indices = @transform_4, window_bounds = array<i64: 36>}, {transform_indices = @transform_5, window_bounds = array<i64: 16>}, {transform_indices = @transform_6, window_bounds = array<i64: 1, 4, 384>}]} {
    %c0 = arith.constant 0 : index
    %c0_0 = arith.constant 0 : index
    %c0_1 = arith.constant 0 : index
    %0 = vector.load %arg1[%c0, %c0_0, %c0_1] : memref<1x4x384xf32, #tpu.memory_space<vmem>>, vector<1x4x384xf32>
    %1 = vector.shape_cast %0 : vector<1x4x384xf32> to vector<4x384xf32>
    %2 = vector.extract_strided_slice %1 {offsets = [0, 0], sizes = [1, 384], strides = [1, 1]} : vector<4x384xf32> to vector<1x384xf32>
    %3 = vector.extract_strided_slice %1 {offsets = [1, 0], sizes = [1, 384], strides = [1, 1]} : vector<4x384xf32> to vector<1x384xf32>
    %4 = vector.extract_strided_slice %1 {offsets = [2, 0], sizes = [1, 384], strides = [1, 1]} : vector<4x384xf32> to vector<1x384xf32>
    %5 = vector.extract_strided_slice %1 {offsets = [3, 0], sizes = [1, 384], strides = [1, 1]} : vector<4x384xf32> to vector<1x384xf32>
    %c0_2 = arith.constant 0 : index
    %6 = memref.load %arg2[%c0_2] : memref<16xf32, #tpu.memory_space<smem>>
    %7 = vector.broadcast %6 : f32 to vector<1x384xf32>
    %8 = arith.mulf %2, %7 : vector<1x384xf32>
    %c4 = arith.constant 4 : index
    %9 = memref.load %arg2[%c4] : memref<16xf32, #tpu.memory_space<smem>>
    %10 = vector.broadcast %9 : f32 to vector<1x384xf32>
    %11 = arith.mulf %3, %10 : vector<1x384xf32>
    %12 = arith.addf %8, %11 : vector<1x384xf32>
    %c8 = arith.constant 8 : index
    %13 = memref.load %arg2[%c8] : memref<16xf32, #tpu.memory_space<smem>>
    %14 = vector.broadcast %13 : f32 to vector<1x384xf32>
    %15 = arith.mulf %4, %14 : vector<1x384xf32>
    %16 = arith.addf %12, %15 : vector<1x384xf32>
    %c12 = arith.constant 12 : index
    %17 = memref.load %arg2[%c12] : memref<16xf32, #tpu.memory_space<smem>>
    %18 = vector.broadcast %17 : f32 to vector<1x384xf32>
    %19 = arith.mulf %5, %18 : vector<1x384xf32>
    %20 = arith.addf %16, %19 : vector<1x384xf32>
    %c16 = arith.constant 16 : index
    %21 = memref.load %arg3[%c16] : memref<36xf32, #tpu.memory_space<smem>>
    %22 = vector.broadcast %21 : f32 to vector<1x384xf32>
    %23 = arith.mulf %20, %22 : vector<1x384xf32>
    %c19_i32 = arith.constant 19 : i32
    %24 = tpu.dynamic_rotate %20 by %c19_i32 dim 1 : vector<1x384xf32>, i32 -> vector<1x384xf32>
    %c0_3 = arith.constant 0 : index
    %25 = memref.load %arg3[%c0_3] : memref<36xf32, #tpu.memory_space<smem>>
    %26 = vector.broadcast %25 : f32 to vector<1x384xf32>
    %27 = arith.mulf %24, %26 : vector<1x384xf32>
    %28 = arith.addf %23, %27 : vector<1x384xf32>
    %c18_i32 = arith.constant 18 : i32
    %29 = tpu.dynamic_rotate %20 by %c18_i32 dim 1 : vector<1x384xf32>, i32 -> vector<1x384xf32>
    %c4_4 = arith.constant 4 : index
    %30 = memref.load %arg3[%c4_4] : memref<36xf32, #tpu.memory_space<smem>>
    %31 = vector.broadcast %30 : f32 to vector<1x384xf32>
    %32 = arith.mulf %29, %31 : vector<1x384xf32>
    %33 = arith.addf %28, %32 : vector<1x384xf32>
    %c17_i32 = arith.constant 17 : i32
    %34 = tpu.dynamic_rotate %20 by %c17_i32 dim 1 : vector<1x384xf32>, i32 -> vector<1x384xf32>
    %c8_5 = arith.constant 8 : index
    %35 = memref.load %arg3[%c8_5] : memref<36xf32, #tpu.memory_space<smem>>
    %36 = vector.broadcast %35 : f32 to vector<1x384xf32>
    %37 = arith.mulf %34, %36 : vector<1x384xf32>
    %38 = arith.addf %33, %37 : vector<1x384xf32>
    %c1_i32 = arith.constant 1 : i32
    %39 = tpu.dynamic_rotate %20 by %c1_i32 dim 1 : vector<1x384xf32>, i32 -> vector<1x384xf32>
    %c12_6 = arith.constant 12 : index
    %40 = memref.load %arg3[%c12_6] : memref<36xf32, #tpu.memory_space<smem>>
    %41 = vector.broadcast %40 : f32 to vector<1x384xf32>
    %42 = arith.mulf %39, %41 : vector<1x384xf32>
    %43 = arith.addf %38, %42 : vector<1x384xf32>
    %c383_i32 = arith.constant 383 : i32
    %44 = tpu.dynamic_rotate %20 by %c383_i32 dim 1 : vector<1x384xf32>, i32 -> vector<1x384xf32>
    %c20 = arith.constant 20 : index
    %45 = memref.load %arg3[%c20] : memref<36xf32, #tpu.memory_space<smem>>
    %46 = vector.broadcast %45 : f32 to vector<1x384xf32>
    %47 = arith.mulf %44, %46 : vector<1x384xf32>
    %48 = arith.addf %43, %47 : vector<1x384xf32>
    %c367_i32 = arith.constant 367 : i32
    %49 = tpu.dynamic_rotate %20 by %c367_i32 dim 1 : vector<1x384xf32>, i32 -> vector<1x384xf32>
    %c24 = arith.constant 24 : index
    %50 = memref.load %arg3[%c24] : memref<36xf32, #tpu.memory_space<smem>>
    %51 = vector.broadcast %50 : f32 to vector<1x384xf32>
    %52 = arith.mulf %49, %51 : vector<1x384xf32>
    %53 = arith.addf %48, %52 : vector<1x384xf32>
    %c366_i32 = arith.constant 366 : i32
    %54 = tpu.dynamic_rotate %20 by %c366_i32 dim 1 : vector<1x384xf32>, i32 -> vector<1x384xf32>
    %c28 = arith.constant 28 : index
    %55 = memref.load %arg3[%c28] : memref<36xf32, #tpu.memory_space<smem>>
    %56 = vector.broadcast %55 : f32 to vector<1x384xf32>
    %57 = arith.mulf %54, %56 : vector<1x384xf32>
    %58 = arith.addf %53, %57 : vector<1x384xf32>
    %c365_i32 = arith.constant 365 : i32
    %59 = tpu.dynamic_rotate %20 by %c365_i32 dim 1 : vector<1x384xf32>, i32 -> vector<1x384xf32>
    %c32 = arith.constant 32 : index
    %60 = memref.load %arg3[%c32] : memref<36xf32, #tpu.memory_space<smem>>
    %61 = vector.broadcast %60 : f32 to vector<1x384xf32>
    %62 = arith.mulf %59, %61 : vector<1x384xf32>
    %63 = arith.addf %58, %62 : vector<1x384xf32>
    %c0_7 = arith.constant 0 : index
    %64 = memref.load %arg4[%c0_7] : memref<16xf32, #tpu.memory_space<smem>>
    %65 = vector.broadcast %64 : f32 to vector<1x384xf32>
    %66 = arith.mulf %2, %65 : vector<1x384xf32>
    %c4_8 = arith.constant 4 : index
    %67 = memref.load %arg4[%c4_8] : memref<16xf32, #tpu.memory_space<smem>>
    %68 = vector.broadcast %67 : f32 to vector<1x384xf32>
    %69 = arith.mulf %3, %68 : vector<1x384xf32>
    %70 = arith.addf %66, %69 : vector<1x384xf32>
    %c8_9 = arith.constant 8 : index
    %71 = memref.load %arg4[%c8_9] : memref<16xf32, #tpu.memory_space<smem>>
    %72 = vector.broadcast %71 : f32 to vector<1x384xf32>
    %73 = arith.mulf %4, %72 : vector<1x384xf32>
    %74 = arith.addf %70, %73 : vector<1x384xf32>
    %c12_10 = arith.constant 12 : index
    %75 = memref.load %arg4[%c12_10] : memref<16xf32, #tpu.memory_space<smem>>
    %76 = vector.broadcast %75 : f32 to vector<1x384xf32>
    %77 = arith.mulf %5, %76 : vector<1x384xf32>
    %78 = arith.addf %74, %77 : vector<1x384xf32>
    %c16_11 = arith.constant 16 : index
    %79 = memref.load %arg5[%c16_11] : memref<36xf32, #tpu.memory_space<smem>>
    %80 = vector.broadcast %79 : f32 to vector<1x384xf32>
    %81 = arith.mulf %78, %80 : vector<1x384xf32>
    %c19_i32_12 = arith.constant 19 : i32
    %82 = tpu.dynamic_rotate %78 by %c19_i32_12 dim 1 : vector<1x384xf32>, i32 -> vector<1x384xf32>
    %c0_13 = arith.constant 0 : index
    %83 = memref.load %arg5[%c0_13] : memref<36xf32, #tpu.memory_space<smem>>
    %84 = vector.broadcast %83 : f32 to vector<1x384xf32>
    %85 = arith.mulf %82, %84 : vector<1x384xf32>
    %86 = arith.addf %81, %85 : vector<1x384xf32>
    %c18_i32_14 = arith.constant 18 : i32
    %87 = tpu.dynamic_rotate %78 by %c18_i32_14 dim 1 : vector<1x384xf32>, i32 -> vector<1x384xf32>
    %c4_15 = arith.constant 4 : index
    %88 = memref.load %arg5[%c4_15] : memref<36xf32, #tpu.memory_space<smem>>
    %89 = vector.broadcast %88 : f32 to vector<1x384xf32>
    %90 = arith.mulf %87, %89 : vector<1x384xf32>
    %91 = arith.addf %86, %90 : vector<1x384xf32>
    %c17_i32_16 = arith.constant 17 : i32
    %92 = tpu.dynamic_rotate %78 by %c17_i32_16 dim 1 : vector<1x384xf32>, i32 -> vector<1x384xf32>
    %c8_17 = arith.constant 8 : index
    %93 = memref.load %arg5[%c8_17] : memref<36xf32, #tpu.memory_space<smem>>
    %94 = vector.broadcast %93 : f32 to vector<1x384xf32>
    %95 = arith.mulf %92, %94 : vector<1x384xf32>
    %96 = arith.addf %91, %95 : vector<1x384xf32>
    %c1_i32_18 = arith.constant 1 : i32
    %97 = tpu.dynamic_rotate %78 by %c1_i32_18 dim 1 : vector<1x384xf32>, i32 -> vector<1x384xf32>
    %c12_19 = arith.constant 12 : index
    %98 = memref.load %arg5[%c12_19] : memref<36xf32, #tpu.memory_space<smem>>
    %99 = vector.broadcast %98 : f32 to vector<1x384xf32>
    %100 = arith.mulf %97, %99 : vector<1x384xf32>
    %101 = arith.addf %96, %100 : vector<1x384xf32>
    %c383_i32_20 = arith.constant 383 : i32
    %102 = tpu.dynamic_rotate %78 by %c383_i32_20 dim 1 : vector<1x384xf32>, i32 -> vector<1x384xf32>
    %c20_21 = arith.constant 20 : index
    %103 = memref.load %arg5[%c20_21] : memref<36xf32, #tpu.memory_space<smem>>
    %104 = vector.broadcast %103 : f32 to vector<1x384xf32>
    %105 = arith.mulf %102, %104 : vector<1x384xf32>
    %106 = arith.addf %101, %105 : vector<1x384xf32>
    %c367_i32_22 = arith.constant 367 : i32
    %107 = tpu.dynamic_rotate %78 by %c367_i32_22 dim 1 : vector<1x384xf32>, i32 -> vector<1x384xf32>
    %c24_23 = arith.constant 24 : index
    %108 = memref.load %arg5[%c24_23] : memref<36xf32, #tpu.memory_space<smem>>
    %109 = vector.broadcast %108 : f32 to vector<1x384xf32>
    %110 = arith.mulf %107, %109 : vector<1x384xf32>
    %111 = arith.addf %106, %110 : vector<1x384xf32>
    %c366_i32_24 = arith.constant 366 : i32
    %112 = tpu.dynamic_rotate %78 by %c366_i32_24 dim 1 : vector<1x384xf32>, i32 -> vector<1x384xf32>
    %c28_25 = arith.constant 28 : index
    %113 = memref.load %arg5[%c28_25] : memref<36xf32, #tpu.memory_space<smem>>
    %114 = vector.broadcast %113 : f32 to vector<1x384xf32>
    %115 = arith.mulf %112, %114 : vector<1x384xf32>
    %116 = arith.addf %111, %115 : vector<1x384xf32>
    %c365_i32_26 = arith.constant 365 : i32
    %117 = tpu.dynamic_rotate %78 by %c365_i32_26 dim 1 : vector<1x384xf32>, i32 -> vector<1x384xf32>
    %c32_27 = arith.constant 32 : index
    %118 = memref.load %arg5[%c32_27] : memref<36xf32, #tpu.memory_space<smem>>
    %119 = vector.broadcast %118 : f32 to vector<1x384xf32>
    %120 = arith.mulf %117, %119 : vector<1x384xf32>
    %121 = arith.addf %116, %120 : vector<1x384xf32>
    %cst = arith.constant 0.000000e+00 : f32
    %122 = vector.broadcast %cst : f32 to vector<1x384xf32>
    %123 = arith.subf %122, %121 : vector<1x384xf32>
    %124 = math.exp %123 : vector<1x384xf32>
    %cst_28 = arith.constant 1.000000e+00 : f32
    %125 = vector.broadcast %cst_28 : f32 to vector<1x384xf32>
    %126 = arith.addf %125, %124 : vector<1x384xf32>
    %cst_29 = arith.constant 1.000000e+00 : f32
    %127 = vector.broadcast %cst_29 : f32 to vector<1x384xf32>
    %128 = arith.divf %127, %126 : vector<1x384xf32>
    %129 = arith.mulf %121, %128 : vector<1x384xf32>
    %130 = arith.mulf %63, %129 : vector<1x384xf32>
    %c1 = arith.constant 1 : index
    %131 = memref.load %arg2[%c1] : memref<16xf32, #tpu.memory_space<smem>>
    %132 = vector.broadcast %131 : f32 to vector<1x384xf32>
    %133 = arith.mulf %2, %132 : vector<1x384xf32>
    %c5 = arith.constant 5 : index
    %134 = memref.load %arg2[%c5] : memref<16xf32, #tpu.memory_space<smem>>
    %135 = vector.broadcast %134 : f32 to vector<1x384xf32>
    %136 = arith.mulf %3, %135 : vector<1x384xf32>
    %137 = arith.addf %133, %136 : vector<1x384xf32>
    %c9 = arith.constant 9 : index
    %138 = memref.load %arg2[%c9] : memref<16xf32, #tpu.memory_space<smem>>
    %139 = vector.broadcast %138 : f32 to vector<1x384xf32>
    %140 = arith.mulf %4, %139 : vector<1x384xf32>
    %141 = arith.addf %137, %140 : vector<1x384xf32>
    %c13 = arith.constant 13 : index
    %142 = memref.load %arg2[%c13] : memref<16xf32, #tpu.memory_space<smem>>
    %143 = vector.broadcast %142 : f32 to vector<1x384xf32>
    %144 = arith.mulf %5, %143 : vector<1x384xf32>
    %145 = arith.addf %141, %144 : vector<1x384xf32>
    %c17 = arith.constant 17 : index
    %146 = memref.load %arg3[%c17] : memref<36xf32, #tpu.memory_space<smem>>
    %147 = vector.broadcast %146 : f32 to vector<1x384xf32>
    %148 = arith.mulf %145, %147 : vector<1x384xf32>
    %c19_i32_30 = arith.constant 19 : i32
    %149 = tpu.dynamic_rotate %145 by %c19_i32_30 dim 1 : vector<1x384xf32>, i32 -> vector<1x384xf32>
    %c1_31 = arith.constant 1 : index
    %150 = memref.load %arg3[%c1_31] : memref<36xf32, #tpu.memory_space<smem>>
    %151 = vector.broadcast %150 : f32 to vector<1x384xf32>
    %152 = arith.mulf %149, %151 : vector<1x384xf32>
    %153 = arith.addf %148, %152 : vector<1x384xf32>
    %c18_i32_32 = arith.constant 18 : i32
    %154 = tpu.dynamic_rotate %145 by %c18_i32_32 dim 1 : vector<1x384xf32>, i32 -> vector<1x384xf32>
    %c5_33 = arith.constant 5 : index
    %155 = memref.load %arg3[%c5_33] : memref<36xf32, #tpu.memory_space<smem>>
    %156 = vector.broadcast %155 : f32 to vector<1x384xf32>
    %157 = arith.mulf %154, %156 : vector<1x384xf32>
    %158 = arith.addf %153, %157 : vector<1x384xf32>
    %c17_i32_34 = arith.constant 17 : i32
    %159 = tpu.dynamic_rotate %145 by %c17_i32_34 dim 1 : vector<1x384xf32>, i32 -> vector<1x384xf32>
    %c9_35 = arith.constant 9 : index
    %160 = memref.load %arg3[%c9_35] : memref<36xf32, #tpu.memory_space<smem>>
    %161 = vector.broadcast %160 : f32 to vector<1x384xf32>
    %162 = arith.mulf %159, %161 : vector<1x384xf32>
    %163 = arith.addf %158, %162 : vector<1x384xf32>
    %c1_i32_36 = arith.constant 1 : i32
    %164 = tpu.dynamic_rotate %145 by %c1_i32_36 dim 1 : vector<1x384xf32>, i32 -> vector<1x384xf32>
    %c13_37 = arith.constant 13 : index
    %165 = memref.load %arg3[%c13_37] : memref<36xf32, #tpu.memory_space<smem>>
    %166 = vector.broadcast %165 : f32 to vector<1x384xf32>
    %167 = arith.mulf %164, %166 : vector<1x384xf32>
    %168 = arith.addf %163, %167 : vector<1x384xf32>
    %c383_i32_38 = arith.constant 383 : i32
    %169 = tpu.dynamic_rotate %145 by %c383_i32_38 dim 1 : vector<1x384xf32>, i32 -> vector<1x384xf32>
    %c21 = arith.constant 21 : index
    %170 = memref.load %arg3[%c21] : memref<36xf32, #tpu.memory_space<smem>>
    %171 = vector.broadcast %170 : f32 to vector<1x384xf32>
    %172 = arith.mulf %169, %171 : vector<1x384xf32>
    %173 = arith.addf %168, %172 : vector<1x384xf32>
    %c367_i32_39 = arith.constant 367 : i32
    %174 = tpu.dynamic_rotate %145 by %c367_i32_39 dim 1 : vector<1x384xf32>, i32 -> vector<1x384xf32>
    %c25 = arith.constant 25 : index
    %175 = memref.load %arg3[%c25] : memref<36xf32, #tpu.memory_space<smem>>
    %176 = vector.broadcast %175 : f32 to vector<1x384xf32>
    %177 = arith.mulf %174, %176 : vector<1x384xf32>
    %178 = arith.addf %173, %177 : vector<1x384xf32>
    %c366_i32_40 = arith.constant 366 : i32
    %179 = tpu.dynamic_rotate %145 by %c366_i32_40 dim 1 : vector<1x384xf32>, i32 -> vector<1x384xf32>
    %c29 = arith.constant 29 : index
    %180 = memref.load %arg3[%c29] : memref<36xf32, #tpu.memory_space<smem>>
    %181 = vector.broadcast %180 : f32 to vector<1x384xf32>
    %182 = arith.mulf %179, %181 : vector<1x384xf32>
    %183 = arith.addf %178, %182 : vector<1x384xf32>
    %c365_i32_41 = arith.constant 365 : i32
    %184 = tpu.dynamic_rotate %145 by %c365_i32_41 dim 1 : vector<1x384xf32>, i32 -> vector<1x384xf32>
    %c33 = arith.constant 33 : index
    %185 = memref.load %arg3[%c33] : memref<36xf32, #tpu.memory_space<smem>>
    %186 = vector.broadcast %185 : f32 to vector<1x384xf32>
    %187 = arith.mulf %184, %186 : vector<1x384xf32>
    %188 = arith.addf %183, %187 : vector<1x384xf32>
    %c1_42 = arith.constant 1 : index
    %189 = memref.load %arg4[%c1_42] : memref<16xf32, #tpu.memory_space<smem>>
    %190 = vector.broadcast %189 : f32 to vector<1x384xf32>
    %191 = arith.mulf %2, %190 : vector<1x384xf32>
    %c5_43 = arith.constant 5 : index
    %192 = memref.load %arg4[%c5_43] : memref<16xf32, #tpu.memory_space<smem>>
    %193 = vector.broadcast %192 : f32 to vector<1x384xf32>
    %194 = arith.mulf %3, %193 : vector<1x384xf32>
    %195 = arith.addf %191, %194 : vector<1x384xf32>
    %c9_44 = arith.constant 9 : index
    %196 = memref.load %arg4[%c9_44] : memref<16xf32, #tpu.memory_space<smem>>
    %197 = vector.broadcast %196 : f32 to vector<1x384xf32>
    %198 = arith.mulf %4, %197 : vector<1x384xf32>
    %199 = arith.addf %195, %198 : vector<1x384xf32>
    %c13_45 = arith.constant 13 : index
    %200 = memref.load %arg4[%c13_45] : memref<16xf32, #tpu.memory_space<smem>>
    %201 = vector.broadcast %200 : f32 to vector<1x384xf32>
    %202 = arith.mulf %5, %201 : vector<1x384xf32>
    %203 = arith.addf %199, %202 : vector<1x384xf32>
    %c17_46 = arith.constant 17 : index
    %204 = memref.load %arg5[%c17_46] : memref<36xf32, #tpu.memory_space<smem>>
    %205 = vector.broadcast %204 : f32 to vector<1x384xf32>
    %206 = arith.mulf %203, %205 : vector<1x384xf32>
    %c19_i32_47 = arith.constant 19 : i32
    %207 = tpu.dynamic_rotate %203 by %c19_i32_47 dim 1 : vector<1x384xf32>, i32 -> vector<1x384xf32>
    %c1_48 = arith.constant 1 : index
    %208 = memref.load %arg5[%c1_48] : memref<36xf32, #tpu.memory_space<smem>>
    %209 = vector.broadcast %208 : f32 to vector<1x384xf32>
    %210 = arith.mulf %207, %209 : vector<1x384xf32>
    %211 = arith.addf %206, %210 : vector<1x384xf32>
    %c18_i32_49 = arith.constant 18 : i32
    %212 = tpu.dynamic_rotate %203 by %c18_i32_49 dim 1 : vector<1x384xf32>, i32 -> vector<1x384xf32>
    %c5_50 = arith.constant 5 : index
    %213 = memref.load %arg5[%c5_50] : memref<36xf32, #tpu.memory_space<smem>>
    %214 = vector.broadcast %213 : f32 to vector<1x384xf32>
    %215 = arith.mulf %212, %214 : vector<1x384xf32>
    %216 = arith.addf %211, %215 : vector<1x384xf32>
    %c17_i32_51 = arith.constant 17 : i32
    %217 = tpu.dynamic_rotate %203 by %c17_i32_51 dim 1 : vector<1x384xf32>, i32 -> vector<1x384xf32>
    %c9_52 = arith.constant 9 : index
    %218 = memref.load %arg5[%c9_52] : memref<36xf32, #tpu.memory_space<smem>>
    %219 = vector.broadcast %218 : f32 to vector<1x384xf32>
    %220 = arith.mulf %217, %219 : vector<1x384xf32>
    %221 = arith.addf %216, %220 : vector<1x384xf32>
    %c1_i32_53 = arith.constant 1 : i32
    %222 = tpu.dynamic_rotate %203 by %c1_i32_53 dim 1 : vector<1x384xf32>, i32 -> vector<1x384xf32>
    %c13_54 = arith.constant 13 : index
    %223 = memref.load %arg5[%c13_54] : memref<36xf32, #tpu.memory_space<smem>>
    %224 = vector.broadcast %223 : f32 to vector<1x384xf32>
    %225 = arith.mulf %222, %224 : vector<1x384xf32>
    %226 = arith.addf %221, %225 : vector<1x384xf32>
    %c383_i32_55 = arith.constant 383 : i32
    %227 = tpu.dynamic_rotate %203 by %c383_i32_55 dim 1 : vector<1x384xf32>, i32 -> vector<1x384xf32>
    %c21_56 = arith.constant 21 : index
    %228 = memref.load %arg5[%c21_56] : memref<36xf32, #tpu.memory_space<smem>>
    %229 = vector.broadcast %228 : f32 to vector<1x384xf32>
    %230 = arith.mulf %227, %229 : vector<1x384xf32>
    %231 = arith.addf %226, %230 : vector<1x384xf32>
    %c367_i32_57 = arith.constant 367 : i32
    %232 = tpu.dynamic_rotate %203 by %c367_i32_57 dim 1 : vector<1x384xf32>, i32 -> vector<1x384xf32>
    %c25_58 = arith.constant 25 : index
    %233 = memref.load %arg5[%c25_58] : memref<36xf32, #tpu.memory_space<smem>>
    %234 = vector.broadcast %233 : f32 to vector<1x384xf32>
    %235 = arith.mulf %232, %234 : vector<1x384xf32>
    %236 = arith.addf %231, %235 : vector<1x384xf32>
    %c366_i32_59 = arith.constant 366 : i32
    %237 = tpu.dynamic_rotate %203 by %c366_i32_59 dim 1 : vector<1x384xf32>, i32 -> vector<1x384xf32>
    %c29_60 = arith.constant 29 : index
    %238 = memref.load %arg5[%c29_60] : memref<36xf32, #tpu.memory_space<smem>>
    %239 = vector.broadcast %238 : f32 to vector<1x384xf32>
    %240 = arith.mulf %237, %239 : vector<1x384xf32>
    %241 = arith.addf %236, %240 : vector<1x384xf32>
    %c365_i32_61 = arith.constant 365 : i32
    %242 = tpu.dynamic_rotate %203 by %c365_i32_61 dim 1 : vector<1x384xf32>, i32 -> vector<1x384xf32>
    %c33_62 = arith.constant 33 : index
    %243 = memref.load %arg5[%c33_62] : memref<36xf32, #tpu.memory_space<smem>>
    %244 = vector.broadcast %243 : f32 to vector<1x384xf32>
    %245 = arith.mulf %242, %244 : vector<1x384xf32>
    %246 = arith.addf %241, %245 : vector<1x384xf32>
    %cst_63 = arith.constant 0.000000e+00 : f32
    %247 = vector.broadcast %cst_63 : f32 to vector<1x384xf32>
    %248 = arith.subf %247, %246 : vector<1x384xf32>
    %249 = math.exp %248 : vector<1x384xf32>
    %cst_64 = arith.constant 1.000000e+00 : f32
    %250 = vector.broadcast %cst_64 : f32 to vector<1x384xf32>
    %251 = arith.addf %250, %249 : vector<1x384xf32>
    %cst_65 = arith.constant 1.000000e+00 : f32
    %252 = vector.broadcast %cst_65 : f32 to vector<1x384xf32>
    %253 = arith.divf %252, %251 : vector<1x384xf32>
    %254 = arith.mulf %246, %253 : vector<1x384xf32>
    %255 = arith.mulf %188, %254 : vector<1x384xf32>
    %c2 = arith.constant 2 : index
    %256 = memref.load %arg2[%c2] : memref<16xf32, #tpu.memory_space<smem>>
    %257 = vector.broadcast %256 : f32 to vector<1x384xf32>
    %258 = arith.mulf %2, %257 : vector<1x384xf32>
    %c6 = arith.constant 6 : index
    %259 = memref.load %arg2[%c6] : memref<16xf32, #tpu.memory_space<smem>>
    %260 = vector.broadcast %259 : f32 to vector<1x384xf32>
    %261 = arith.mulf %3, %260 : vector<1x384xf32>
    %262 = arith.addf %258, %261 : vector<1x384xf32>
    %c10 = arith.constant 10 : index
    %263 = memref.load %arg2[%c10] : memref<16xf32, #tpu.memory_space<smem>>
    %264 = vector.broadcast %263 : f32 to vector<1x384xf32>
    %265 = arith.mulf %4, %264 : vector<1x384xf32>
    %266 = arith.addf %262, %265 : vector<1x384xf32>
    %c14 = arith.constant 14 : index
    %267 = memref.load %arg2[%c14] : memref<16xf32, #tpu.memory_space<smem>>
    %268 = vector.broadcast %267 : f32 to vector<1x384xf32>
    %269 = arith.mulf %5, %268 : vector<1x384xf32>
    %270 = arith.addf %266, %269 : vector<1x384xf32>
    %c18 = arith.constant 18 : index
    %271 = memref.load %arg3[%c18] : memref<36xf32, #tpu.memory_space<smem>>
    %272 = vector.broadcast %271 : f32 to vector<1x384xf32>
    %273 = arith.mulf %270, %272 : vector<1x384xf32>
    %c19_i32_66 = arith.constant 19 : i32
    %274 = tpu.dynamic_rotate %270 by %c19_i32_66 dim 1 : vector<1x384xf32>, i32 -> vector<1x384xf32>
    %c2_67 = arith.constant 2 : index
    %275 = memref.load %arg3[%c2_67] : memref<36xf32, #tpu.memory_space<smem>>
    %276 = vector.broadcast %275 : f32 to vector<1x384xf32>
    %277 = arith.mulf %274, %276 : vector<1x384xf32>
    %278 = arith.addf %273, %277 : vector<1x384xf32>
    %c18_i32_68 = arith.constant 18 : i32
    %279 = tpu.dynamic_rotate %270 by %c18_i32_68 dim 1 : vector<1x384xf32>, i32 -> vector<1x384xf32>
    %c6_69 = arith.constant 6 : index
    %280 = memref.load %arg3[%c6_69] : memref<36xf32, #tpu.memory_space<smem>>
    %281 = vector.broadcast %280 : f32 to vector<1x384xf32>
    %282 = arith.mulf %279, %281 : vector<1x384xf32>
    %283 = arith.addf %278, %282 : vector<1x384xf32>
    %c17_i32_70 = arith.constant 17 : i32
    %284 = tpu.dynamic_rotate %270 by %c17_i32_70 dim 1 : vector<1x384xf32>, i32 -> vector<1x384xf32>
    %c10_71 = arith.constant 10 : index
    %285 = memref.load %arg3[%c10_71] : memref<36xf32, #tpu.memory_space<smem>>
    %286 = vector.broadcast %285 : f32 to vector<1x384xf32>
    %287 = arith.mulf %284, %286 : vector<1x384xf32>
    %288 = arith.addf %283, %287 : vector<1x384xf32>
    %c1_i32_72 = arith.constant 1 : i32
    %289 = tpu.dynamic_rotate %270 by %c1_i32_72 dim 1 : vector<1x384xf32>, i32 -> vector<1x384xf32>
    %c14_73 = arith.constant 14 : index
    %290 = memref.load %arg3[%c14_73] : memref<36xf32, #tpu.memory_space<smem>>
    %291 = vector.broadcast %290 : f32 to vector<1x384xf32>
    %292 = arith.mulf %289, %291 : vector<1x384xf32>
    %293 = arith.addf %288, %292 : vector<1x384xf32>
    %c383_i32_74 = arith.constant 383 : i32
    %294 = tpu.dynamic_rotate %270 by %c383_i32_74 dim 1 : vector<1x384xf32>, i32 -> vector<1x384xf32>
    %c22 = arith.constant 22 : index
    %295 = memref.load %arg3[%c22] : memref<36xf32, #tpu.memory_space<smem>>
    %296 = vector.broadcast %295 : f32 to vector<1x384xf32>
    %297 = arith.mulf %294, %296 : vector<1x384xf32>
    %298 = arith.addf %293, %297 : vector<1x384xf32>
    %c367_i32_75 = arith.constant 367 : i32
    %299 = tpu.dynamic_rotate %270 by %c367_i32_75 dim 1 : vector<1x384xf32>, i32 -> vector<1x384xf32>
    %c26 = arith.constant 26 : index
    %300 = memref.load %arg3[%c26] : memref<36xf32, #tpu.memory_space<smem>>
    %301 = vector.broadcast %300 : f32 to vector<1x384xf32>
    %302 = arith.mulf %299, %301 : vector<1x384xf32>
    %303 = arith.addf %298, %302 : vector<1x384xf32>
    %c366_i32_76 = arith.constant 366 : i32
    %304 = tpu.dynamic_rotate %270 by %c366_i32_76 dim 1 : vector<1x384xf32>, i32 -> vector<1x384xf32>
    %c30 = arith.constant 30 : index
    %305 = memref.load %arg3[%c30] : memref<36xf32, #tpu.memory_space<smem>>
    %306 = vector.broadcast %305 : f32 to vector<1x384xf32>
    %307 = arith.mulf %304, %306 : vector<1x384xf32>
    %308 = arith.addf %303, %307 : vector<1x384xf32>
    %c365_i32_77 = arith.constant 365 : i32
    %309 = tpu.dynamic_rotate %270 by %c365_i32_77 dim 1 : vector<1x384xf32>, i32 -> vector<1x384xf32>
    %c34 = arith.constant 34 : index
    %310 = memref.load %arg3[%c34] : memref<36xf32, #tpu.memory_space<smem>>
    %311 = vector.broadcast %310 : f32 to vector<1x384xf32>
    %312 = arith.mulf %309, %311 : vector<1x384xf32>
    %313 = arith.addf %308, %312 : vector<1x384xf32>
    %c2_78 = arith.constant 2 : index
    %314 = memref.load %arg4[%c2_78] : memref<16xf32, #tpu.memory_space<smem>>
    %315 = vector.broadcast %314 : f32 to vector<1x384xf32>
    %316 = arith.mulf %2, %315 : vector<1x384xf32>
    %c6_79 = arith.constant 6 : index
    %317 = memref.load %arg4[%c6_79] : memref<16xf32, #tpu.memory_space<smem>>
    %318 = vector.broadcast %317 : f32 to vector<1x384xf32>
    %319 = arith.mulf %3, %318 : vector<1x384xf32>
    %320 = arith.addf %316, %319 : vector<1x384xf32>
    %c10_80 = arith.constant 10 : index
    %321 = memref.load %arg4[%c10_80] : memref<16xf32, #tpu.memory_space<smem>>
    %322 = vector.broadcast %321 : f32 to vector<1x384xf32>
    %323 = arith.mulf %4, %322 : vector<1x384xf32>
    %324 = arith.addf %320, %323 : vector<1x384xf32>
    %c14_81 = arith.constant 14 : index
    %325 = memref.load %arg4[%c14_81] : memref<16xf32, #tpu.memory_space<smem>>
    %326 = vector.broadcast %325 : f32 to vector<1x384xf32>
    %327 = arith.mulf %5, %326 : vector<1x384xf32>
    %328 = arith.addf %324, %327 : vector<1x384xf32>
    %c18_82 = arith.constant 18 : index
    %329 = memref.load %arg5[%c18_82] : memref<36xf32, #tpu.memory_space<smem>>
    %330 = vector.broadcast %329 : f32 to vector<1x384xf32>
    %331 = arith.mulf %328, %330 : vector<1x384xf32>
    %c19_i32_83 = arith.constant 19 : i32
    %332 = tpu.dynamic_rotate %328 by %c19_i32_83 dim 1 : vector<1x384xf32>, i32 -> vector<1x384xf32>
    %c2_84 = arith.constant 2 : index
    %333 = memref.load %arg5[%c2_84] : memref<36xf32, #tpu.memory_space<smem>>
    %334 = vector.broadcast %333 : f32 to vector<1x384xf32>
    %335 = arith.mulf %332, %334 : vector<1x384xf32>
    %336 = arith.addf %331, %335 : vector<1x384xf32>
    %c18_i32_85 = arith.constant 18 : i32
    %337 = tpu.dynamic_rotate %328 by %c18_i32_85 dim 1 : vector<1x384xf32>, i32 -> vector<1x384xf32>
    %c6_86 = arith.constant 6 : index
    %338 = memref.load %arg5[%c6_86] : memref<36xf32, #tpu.memory_space<smem>>
    %339 = vector.broadcast %338 : f32 to vector<1x384xf32>
    %340 = arith.mulf %337, %339 : vector<1x384xf32>
    %341 = arith.addf %336, %340 : vector<1x384xf32>
    %c17_i32_87 = arith.constant 17 : i32
    %342 = tpu.dynamic_rotate %328 by %c17_i32_87 dim 1 : vector<1x384xf32>, i32 -> vector<1x384xf32>
    %c10_88 = arith.constant 10 : index
    %343 = memref.load %arg5[%c10_88] : memref<36xf32, #tpu.memory_space<smem>>
    %344 = vector.broadcast %343 : f32 to vector<1x384xf32>
    %345 = arith.mulf %342, %344 : vector<1x384xf32>
    %346 = arith.addf %341, %345 : vector<1x384xf32>
    %c1_i32_89 = arith.constant 1 : i32
    %347 = tpu.dynamic_rotate %328 by %c1_i32_89 dim 1 : vector<1x384xf32>, i32 -> vector<1x384xf32>
    %c14_90 = arith.constant 14 : index
    %348 = memref.load %arg5[%c14_90] : memref<36xf32, #tpu.memory_space<smem>>
    %349 = vector.broadcast %348 : f32 to vector<1x384xf32>
    %350 = arith.mulf %347, %349 : vector<1x384xf32>
    %351 = arith.addf %346, %350 : vector<1x384xf32>
    %c383_i32_91 = arith.constant 383 : i32
    %352 = tpu.dynamic_rotate %328 by %c383_i32_91 dim 1 : vector<1x384xf32>, i32 -> vector<1x384xf32>
    %c22_92 = arith.constant 22 : index
    %353 = memref.load %arg5[%c22_92] : memref<36xf32, #tpu.memory_space<smem>>
    %354 = vector.broadcast %353 : f32 to vector<1x384xf32>
    %355 = arith.mulf %352, %354 : vector<1x384xf32>
    %356 = arith.addf %351, %355 : vector<1x384xf32>
    %c367_i32_93 = arith.constant 367 : i32
    %357 = tpu.dynamic_rotate %328 by %c367_i32_93 dim 1 : vector<1x384xf32>, i32 -> vector<1x384xf32>
    %c26_94 = arith.constant 26 : index
    %358 = memref.load %arg5[%c26_94] : memref<36xf32, #tpu.memory_space<smem>>
    %359 = vector.broadcast %358 : f32 to vector<1x384xf32>
    %360 = arith.mulf %357, %359 : vector<1x384xf32>
    %361 = arith.addf %356, %360 : vector<1x384xf32>
    %c366_i32_95 = arith.constant 366 : i32
    %362 = tpu.dynamic_rotate %328 by %c366_i32_95 dim 1 : vector<1x384xf32>, i32 -> vector<1x384xf32>
    %c30_96 = arith.constant 30 : index
    %363 = memref.load %arg5[%c30_96] : memref<36xf32, #tpu.memory_space<smem>>
    %364 = vector.broadcast %363 : f32 to vector<1x384xf32>
    %365 = arith.mulf %362, %364 : vector<1x384xf32>
    %366 = arith.addf %361, %365 : vector<1x384xf32>
    %c365_i32_97 = arith.constant 365 : i32
    %367 = tpu.dynamic_rotate %328 by %c365_i32_97 dim 1 : vector<1x384xf32>, i32 -> vector<1x384xf32>
    %c34_98 = arith.constant 34 : index
    %368 = memref.load %arg5[%c34_98] : memref<36xf32, #tpu.memory_space<smem>>
    %369 = vector.broadcast %368 : f32 to vector<1x384xf32>
    %370 = arith.mulf %367, %369 : vector<1x384xf32>
    %371 = arith.addf %366, %370 : vector<1x384xf32>
    %cst_99 = arith.constant 0.000000e+00 : f32
    %372 = vector.broadcast %cst_99 : f32 to vector<1x384xf32>
    %373 = arith.subf %372, %371 : vector<1x384xf32>
    %374 = math.exp %373 : vector<1x384xf32>
    %cst_100 = arith.constant 1.000000e+00 : f32
    %375 = vector.broadcast %cst_100 : f32 to vector<1x384xf32>
    %376 = arith.addf %375, %374 : vector<1x384xf32>
    %cst_101 = arith.constant 1.000000e+00 : f32
    %377 = vector.broadcast %cst_101 : f32 to vector<1x384xf32>
    %378 = arith.divf %377, %376 : vector<1x384xf32>
    %379 = arith.mulf %371, %378 : vector<1x384xf32>
    %380 = arith.mulf %313, %379 : vector<1x384xf32>
    %c3 = arith.constant 3 : index
    %381 = memref.load %arg2[%c3] : memref<16xf32, #tpu.memory_space<smem>>
    %382 = vector.broadcast %381 : f32 to vector<1x384xf32>
    %383 = arith.mulf %2, %382 : vector<1x384xf32>
    %c7 = arith.constant 7 : index
    %384 = memref.load %arg2[%c7] : memref<16xf32, #tpu.memory_space<smem>>
    %385 = vector.broadcast %384 : f32 to vector<1x384xf32>
    %386 = arith.mulf %3, %385 : vector<1x384xf32>
    %387 = arith.addf %383, %386 : vector<1x384xf32>
    %c11 = arith.constant 11 : index
    %388 = memref.load %arg2[%c11] : memref<16xf32, #tpu.memory_space<smem>>
    %389 = vector.broadcast %388 : f32 to vector<1x384xf32>
    %390 = arith.mulf %4, %389 : vector<1x384xf32>
    %391 = arith.addf %387, %390 : vector<1x384xf32>
    %c15 = arith.constant 15 : index
    %392 = memref.load %arg2[%c15] : memref<16xf32, #tpu.memory_space<smem>>
    %393 = vector.broadcast %392 : f32 to vector<1x384xf32>
    %394 = arith.mulf %5, %393 : vector<1x384xf32>
    %395 = arith.addf %391, %394 : vector<1x384xf32>
    %c19 = arith.constant 19 : index
    %396 = memref.load %arg3[%c19] : memref<36xf32, #tpu.memory_space<smem>>
    %397 = vector.broadcast %396 : f32 to vector<1x384xf32>
    %398 = arith.mulf %395, %397 : vector<1x384xf32>
    %c19_i32_102 = arith.constant 19 : i32
    %399 = tpu.dynamic_rotate %395 by %c19_i32_102 dim 1 : vector<1x384xf32>, i32 -> vector<1x384xf32>
    %c3_103 = arith.constant 3 : index
    %400 = memref.load %arg3[%c3_103] : memref<36xf32, #tpu.memory_space<smem>>
    %401 = vector.broadcast %400 : f32 to vector<1x384xf32>
    %402 = arith.mulf %399, %401 : vector<1x384xf32>
    %403 = arith.addf %398, %402 : vector<1x384xf32>
    %c18_i32_104 = arith.constant 18 : i32
    %404 = tpu.dynamic_rotate %395 by %c18_i32_104 dim 1 : vector<1x384xf32>, i32 -> vector<1x384xf32>
    %c7_105 = arith.constant 7 : index
    %405 = memref.load %arg3[%c7_105] : memref<36xf32, #tpu.memory_space<smem>>
    %406 = vector.broadcast %405 : f32 to vector<1x384xf32>
    %407 = arith.mulf %404, %406 : vector<1x384xf32>
    %408 = arith.addf %403, %407 : vector<1x384xf32>
    %c17_i32_106 = arith.constant 17 : i32
    %409 = tpu.dynamic_rotate %395 by %c17_i32_106 dim 1 : vector<1x384xf32>, i32 -> vector<1x384xf32>
    %c11_107 = arith.constant 11 : index
    %410 = memref.load %arg3[%c11_107] : memref<36xf32, #tpu.memory_space<smem>>
    %411 = vector.broadcast %410 : f32 to vector<1x384xf32>
    %412 = arith.mulf %409, %411 : vector<1x384xf32>
    %413 = arith.addf %408, %412 : vector<1x384xf32>
    %c1_i32_108 = arith.constant 1 : i32
    %414 = tpu.dynamic_rotate %395 by %c1_i32_108 dim 1 : vector<1x384xf32>, i32 -> vector<1x384xf32>
    %c15_109 = arith.constant 15 : index
    %415 = memref.load %arg3[%c15_109] : memref<36xf32, #tpu.memory_space<smem>>
    %416 = vector.broadcast %415 : f32 to vector<1x384xf32>
    %417 = arith.mulf %414, %416 : vector<1x384xf32>
    %418 = arith.addf %413, %417 : vector<1x384xf32>
    %c383_i32_110 = arith.constant 383 : i32
    %419 = tpu.dynamic_rotate %395 by %c383_i32_110 dim 1 : vector<1x384xf32>, i32 -> vector<1x384xf32>
    %c23 = arith.constant 23 : index
    %420 = memref.load %arg3[%c23] : memref<36xf32, #tpu.memory_space<smem>>
    %421 = vector.broadcast %420 : f32 to vector<1x384xf32>
    %422 = arith.mulf %419, %421 : vector<1x384xf32>
    %423 = arith.addf %418, %422 : vector<1x384xf32>
    %c367_i32_111 = arith.constant 367 : i32
    %424 = tpu.dynamic_rotate %395 by %c367_i32_111 dim 1 : vector<1x384xf32>, i32 -> vector<1x384xf32>
    %c27 = arith.constant 27 : index
    %425 = memref.load %arg3[%c27] : memref<36xf32, #tpu.memory_space<smem>>
    %426 = vector.broadcast %425 : f32 to vector<1x384xf32>
    %427 = arith.mulf %424, %426 : vector<1x384xf32>
    %428 = arith.addf %423, %427 : vector<1x384xf32>
    %c366_i32_112 = arith.constant 366 : i32
    %429 = tpu.dynamic_rotate %395 by %c366_i32_112 dim 1 : vector<1x384xf32>, i32 -> vector<1x384xf32>
    %c31 = arith.constant 31 : index
    %430 = memref.load %arg3[%c31] : memref<36xf32, #tpu.memory_space<smem>>
    %431 = vector.broadcast %430 : f32 to vector<1x384xf32>
    %432 = arith.mulf %429, %431 : vector<1x384xf32>
    %433 = arith.addf %428, %432 : vector<1x384xf32>
    %c365_i32_113 = arith.constant 365 : i32
    %434 = tpu.dynamic_rotate %395 by %c365_i32_113 dim 1 : vector<1x384xf32>, i32 -> vector<1x384xf32>
    %c35 = arith.constant 35 : index
    %435 = memref.load %arg3[%c35] : memref<36xf32, #tpu.memory_space<smem>>
    %436 = vector.broadcast %435 : f32 to vector<1x384xf32>
    %437 = arith.mulf %434, %436 : vector<1x384xf32>
    %438 = arith.addf %433, %437 : vector<1x384xf32>
    %c3_114 = arith.constant 3 : index
    %439 = memref.load %arg4[%c3_114] : memref<16xf32, #tpu.memory_space<smem>>
    %440 = vector.broadcast %439 : f32 to vector<1x384xf32>
    %441 = arith.mulf %2, %440 : vector<1x384xf32>
    %c7_115 = arith.constant 7 : index
    %442 = memref.load %arg4[%c7_115] : memref<16xf32, #tpu.memory_space<smem>>
    %443 = vector.broadcast %442 : f32 to vector<1x384xf32>
    %444 = arith.mulf %3, %443 : vector<1x384xf32>
    %445 = arith.addf %441, %444 : vector<1x384xf32>
    %c11_116 = arith.constant 11 : index
    %446 = memref.load %arg4[%c11_116] : memref<16xf32, #tpu.memory_space<smem>>
    %447 = vector.broadcast %446 : f32 to vector<1x384xf32>
    %448 = arith.mulf %4, %447 : vector<1x384xf32>
    %449 = arith.addf %445, %448 : vector<1x384xf32>
    %c15_117 = arith.constant 15 : index
    %450 = memref.load %arg4[%c15_117] : memref<16xf32, #tpu.memory_space<smem>>
    %451 = vector.broadcast %450 : f32 to vector<1x384xf32>
    %452 = arith.mulf %5, %451 : vector<1x384xf32>
    %453 = arith.addf %449, %452 : vector<1x384xf32>
    %c19_118 = arith.constant 19 : index
    %454 = memref.load %arg5[%c19_118] : memref<36xf32, #tpu.memory_space<smem>>
    %455 = vector.broadcast %454 : f32 to vector<1x384xf32>
    %456 = arith.mulf %453, %455 : vector<1x384xf32>
    %c19_i32_119 = arith.constant 19 : i32
    %457 = tpu.dynamic_rotate %453 by %c19_i32_119 dim 1 : vector<1x384xf32>, i32 -> vector<1x384xf32>
    %c3_120 = arith.constant 3 : index
    %458 = memref.load %arg5[%c3_120] : memref<36xf32, #tpu.memory_space<smem>>
    %459 = vector.broadcast %458 : f32 to vector<1x384xf32>
    %460 = arith.mulf %457, %459 : vector<1x384xf32>
    %461 = arith.addf %456, %460 : vector<1x384xf32>
    %c18_i32_121 = arith.constant 18 : i32
    %462 = tpu.dynamic_rotate %453 by %c18_i32_121 dim 1 : vector<1x384xf32>, i32 -> vector<1x384xf32>
    %c7_122 = arith.constant 7 : index
    %463 = memref.load %arg5[%c7_122] : memref<36xf32, #tpu.memory_space<smem>>
    %464 = vector.broadcast %463 : f32 to vector<1x384xf32>
    %465 = arith.mulf %462, %464 : vector<1x384xf32>
    %466 = arith.addf %461, %465 : vector<1x384xf32>
    %c17_i32_123 = arith.constant 17 : i32
    %467 = tpu.dynamic_rotate %453 by %c17_i32_123 dim 1 : vector<1x384xf32>, i32 -> vector<1x384xf32>
    %c11_124 = arith.constant 11 : index
    %468 = memref.load %arg5[%c11_124] : memref<36xf32, #tpu.memory_space<smem>>
    %469 = vector.broadcast %468 : f32 to vector<1x384xf32>
    %470 = arith.mulf %467, %469 : vector<1x384xf32>
    %471 = arith.addf %466, %470 : vector<1x384xf32>
    %c1_i32_125 = arith.constant 1 : i32
    %472 = tpu.dynamic_rotate %453 by %c1_i32_125 dim 1 : vector<1x384xf32>, i32 -> vector<1x384xf32>
    %c15_126 = arith.constant 15 : index
    %473 = memref.load %arg5[%c15_126] : memref<36xf32, #tpu.memory_space<smem>>
    %474 = vector.broadcast %473 : f32 to vector<1x384xf32>
    %475 = arith.mulf %472, %474 : vector<1x384xf32>
    %476 = arith.addf %471, %475 : vector<1x384xf32>
    %c383_i32_127 = arith.constant 383 : i32
    %477 = tpu.dynamic_rotate %453 by %c383_i32_127 dim 1 : vector<1x384xf32>, i32 -> vector<1x384xf32>
    %c23_128 = arith.constant 23 : index
    %478 = memref.load %arg5[%c23_128] : memref<36xf32, #tpu.memory_space<smem>>
    %479 = vector.broadcast %478 : f32 to vector<1x384xf32>
    %480 = arith.mulf %477, %479 : vector<1x384xf32>
    %481 = arith.addf %476, %480 : vector<1x384xf32>
    %c367_i32_129 = arith.constant 367 : i32
    %482 = tpu.dynamic_rotate %453 by %c367_i32_129 dim 1 : vector<1x384xf32>, i32 -> vector<1x384xf32>
    %c27_130 = arith.constant 27 : index
    %483 = memref.load %arg5[%c27_130] : memref<36xf32, #tpu.memory_space<smem>>
    %484 = vector.broadcast %483 : f32 to vector<1x384xf32>
    %485 = arith.mulf %482, %484 : vector<1x384xf32>
    %486 = arith.addf %481, %485 : vector<1x384xf32>
    %c366_i32_131 = arith.constant 366 : i32
    %487 = tpu.dynamic_rotate %453 by %c366_i32_131 dim 1 : vector<1x384xf32>, i32 -> vector<1x384xf32>
    %c31_132 = arith.constant 31 : index
    %488 = memref.load %arg5[%c31_132] : memref<36xf32, #tpu.memory_space<smem>>
    %489 = vector.broadcast %488 : f32 to vector<1x384xf32>
    %490 = arith.mulf %487, %489 : vector<1x384xf32>
    %491 = arith.addf %486, %490 : vector<1x384xf32>
    %c365_i32_133 = arith.constant 365 : i32
    %492 = tpu.dynamic_rotate %453 by %c365_i32_133 dim 1 : vector<1x384xf32>, i32 -> vector<1x384xf32>
    %c35_134 = arith.constant 35 : index
    %493 = memref.load %arg5[%c35_134] : memref<36xf32, #tpu.memory_space<smem>>
    %494 = vector.broadcast %493 : f32 to vector<1x384xf32>
    %495 = arith.mulf %492, %494 : vector<1x384xf32>
    %496 = arith.addf %491, %495 : vector<1x384xf32>
    %cst_135 = arith.constant 0.000000e+00 : f32
    %497 = vector.broadcast %cst_135 : f32 to vector<1x384xf32>
    %498 = arith.subf %497, %496 : vector<1x384xf32>
    %499 = math.exp %498 : vector<1x384xf32>
    %cst_136 = arith.constant 1.000000e+00 : f32
    %500 = vector.broadcast %cst_136 : f32 to vector<1x384xf32>
    %501 = arith.addf %500, %499 : vector<1x384xf32>
    %cst_137 = arith.constant 1.000000e+00 : f32
    %502 = vector.broadcast %cst_137 : f32 to vector<1x384xf32>
    %503 = arith.divf %502, %501 : vector<1x384xf32>
    %504 = arith.mulf %496, %503 : vector<1x384xf32>
    %505 = arith.mulf %438, %504 : vector<1x384xf32>
    %c0_138 = arith.constant 0 : index
    %506 = memref.load %arg6[%c0_138] : memref<16xf32, #tpu.memory_space<smem>>
    %507 = vector.broadcast %506 : f32 to vector<1x384xf32>
    %508 = arith.mulf %130, %507 : vector<1x384xf32>
    %c4_139 = arith.constant 4 : index
    %509 = memref.load %arg6[%c4_139] : memref<16xf32, #tpu.memory_space<smem>>
    %510 = vector.broadcast %509 : f32 to vector<1x384xf32>
    %511 = arith.mulf %255, %510 : vector<1x384xf32>
    %512 = arith.addf %508, %511 : vector<1x384xf32>
    %c8_140 = arith.constant 8 : index
    %513 = memref.load %arg6[%c8_140] : memref<16xf32, #tpu.memory_space<smem>>
    %514 = vector.broadcast %513 : f32 to vector<1x384xf32>
    %515 = arith.mulf %380, %514 : vector<1x384xf32>
    %516 = arith.addf %512, %515 : vector<1x384xf32>
    %c12_141 = arith.constant 12 : index
    %517 = memref.load %arg6[%c12_141] : memref<16xf32, #tpu.memory_space<smem>>
    %518 = vector.broadcast %517 : f32 to vector<1x384xf32>
    %519 = arith.mulf %505, %518 : vector<1x384xf32>
    %520 = arith.addf %516, %519 : vector<1x384xf32>
    %c0_142 = arith.constant 0 : index
    %c0_143 = arith.constant 0 : index
    %c0_144 = arith.constant 0 : index
    %521 = vector.load %arg7[%c0_142, %c0_143, %c0_144] : memref<1x4x384xf32, #tpu.memory_space<vmem>>, vector<1x1x384xf32>
    %522 = vector.shape_cast %521 : vector<1x1x384xf32> to vector<1x384xf32>
    %523 = vector.shape_cast %520 : vector<1x384xf32> to vector<1x1x384xf32>
    tpu.vector_store %arg7[%c0_142, %c0_143, %c0_144], %523 {strides = array<i32>} : memref<1x4x384xf32, #tpu.memory_space<vmem>>, vector<1x1x384xf32>,
    %c1_145 = arith.constant 1 : index
    %524 = memref.load %arg6[%c1_145] : memref<16xf32, #tpu.memory_space<smem>>
    %525 = vector.broadcast %524 : f32 to vector<1x384xf32>
    %526 = arith.mulf %130, %525 : vector<1x384xf32>
    %c5_146 = arith.constant 5 : index
    %527 = memref.load %arg6[%c5_146] : memref<16xf32, #tpu.memory_space<smem>>
    %528 = vector.broadcast %527 : f32 to vector<1x384xf32>
    %529 = arith.mulf %255, %528 : vector<1x384xf32>
    %530 = arith.addf %526, %529 : vector<1x384xf32>
    %c9_147 = arith.constant 9 : index
    %531 = memref.load %arg6[%c9_147] : memref<16xf32, #tpu.memory_space<smem>>
    %532 = vector.broadcast %531 : f32 to vector<1x384xf32>
    %533 = arith.mulf %380, %532 : vector<1x384xf32>
    %534 = arith.addf %530, %533 : vector<1x384xf32>
    %c13_148 = arith.constant 13 : index
    %535 = memref.load %arg6[%c13_148] : memref<16xf32, #tpu.memory_space<smem>>
    %536 = vector.broadcast %535 : f32 to vector<1x384xf32>
    %537 = arith.mulf %505, %536 : vector<1x384xf32>
    %538 = arith.addf %534, %537 : vector<1x384xf32>
    %c0_149 = arith.constant 0 : index
    %c1_150 = arith.constant 1 : index
    %c0_151 = arith.constant 0 : index
    %539 = vector.load %arg7[%c0_149, %c1_150, %c0_151] : memref<1x4x384xf32, #tpu.memory_space<vmem>>, vector<1x1x384xf32>
    %540 = vector.shape_cast %539 : vector<1x1x384xf32> to vector<1x384xf32>
    %541 = vector.shape_cast %538 : vector<1x384xf32> to vector<1x1x384xf32>
    tpu.vector_store %arg7[%c0_149, %c1_150, %c0_151], %541 {strides = array<i32>} : memref<1x4x384xf32, #tpu.memory_space<vmem>>, vector<1x1x384xf32>,
    %c2_152 = arith.constant 2 : index
    %542 = memref.load %arg6[%c2_152] : memref<16xf32, #tpu.memory_space<smem>>
    %543 = vector.broadcast %542 : f32 to vector<1x384xf32>
    %544 = arith.mulf %130, %543 : vector<1x384xf32>
    %c6_153 = arith.constant 6 : index
    %545 = memref.load %arg6[%c6_153] : memref<16xf32, #tpu.memory_space<smem>>
    %546 = vector.broadcast %545 : f32 to vector<1x384xf32>
    %547 = arith.mulf %255, %546 : vector<1x384xf32>
    %548 = arith.addf %544, %547 : vector<1x384xf32>
    %c10_154 = arith.constant 10 : index
    %549 = memref.load %arg6[%c10_154] : memref<16xf32, #tpu.memory_space<smem>>
    %550 = vector.broadcast %549 : f32 to vector<1x384xf32>
    %551 = arith.mulf %380, %550 : vector<1x384xf32>
    %552 = arith.addf %548, %551 : vector<1x384xf32>
    %c14_155 = arith.constant 14 : index
    %553 = memref.load %arg6[%c14_155] : memref<16xf32, #tpu.memory_space<smem>>
    %554 = vector.broadcast %553 : f32 to vector<1x384xf32>
    %555 = arith.mulf %505, %554 : vector<1x384xf32>
    %556 = arith.addf %552, %555 : vector<1x384xf32>
    %c0_156 = arith.constant 0 : index
    %c2_157 = arith.constant 2 : index
    %c0_158 = arith.constant 0 : index
    %557 = vector.load %arg7[%c0_156, %c2_157, %c0_158] : memref<1x4x384xf32, #tpu.memory_space<vmem>>, vector<1x1x384xf32>
    %558 = vector.shape_cast %557 : vector<1x1x384xf32> to vector<1x384xf32>
    %559 = vector.shape_cast %556 : vector<1x384xf32> to vector<1x1x384xf32>
    tpu.vector_store %arg7[%c0_156, %c2_157, %c0_158], %559 {strides = array<i32>} : memref<1x4x384xf32, #tpu.memory_space<vmem>>, vector<1x1x384xf32>,
    %c3_159 = arith.constant 3 : index
    %560 = memref.load %arg6[%c3_159] : memref<16xf32, #tpu.memory_space<smem>>
    %561 = vector.broadcast %560 : f32 to vector<1x384xf32>
    %562 = arith.mulf %130, %561 : vector<1x384xf32>
    %c7_160 = arith.constant 7 : index
    %563 = memref.load %arg6[%c7_160] : memref<16xf32, #tpu.memory_space<smem>>
    %564 = vector.broadcast %563 : f32 to vector<1x384xf32>
    %565 = arith.mulf %255, %564 : vector<1x384xf32>
    %566 = arith.addf %562, %565 : vector<1x384xf32>
    %c11_161 = arith.constant 11 : index
    %567 = memref.load %arg6[%c11_161] : memref<16xf32, #tpu.memory_space<smem>>
    %568 = vector.broadcast %567 : f32 to vector<1x384xf32>
    %569 = arith.mulf %380, %568 : vector<1x384xf32>
    %570 = arith.addf %566, %569 : vector<1x384xf32>
    %c15_162 = arith.constant 15 : index
    %571 = memref.load %arg6[%c15_162] : memref<16xf32, #tpu.memory_space<smem>>
    %572 = vector.broadcast %571 : f32 to vector<1x384xf32>
    %573 = arith.mulf %505, %572 : vector<1x384xf32>
    %574 = arith.addf %570, %573 : vector<1x384xf32>
    %c0_163 = arith.constant 0 : index
    %c3_164 = arith.constant 3 : index
    %c0_165 = arith.constant 0 : index
    %575 = vector.load %arg7[%c0_163, %c3_164, %c0_165] : memref<1x4x384xf32, #tpu.memory_space<vmem>>, vector<1x1x384xf32>
    %576 = vector.shape_cast %575 : vector<1x1x384xf32> to vector<1x384xf32>
    %577 = vector.shape_cast %574 : vector<1x384xf32> to vector<1x1x384xf32>
    tpu.vector_store %arg7[%c0_163, %c3_164, %c0_165], %577 {strides = array<i32>} : memref<1x4x384xf32, #tpu.memory_space<vmem>>, vector<1x1x384xf32>,
    return
  }
  func.func @transform_0(%arg0: i32) -> (i32, i32, i32) {
    %c0_i32 = arith.constant 0 : i32
    %c0_i32_0 = arith.constant 0 : i32
    %c0_i32_1 = arith.constant 0 : i32
    return %arg0, %c0_i32, %c0_i32_0 : i32, i32, i32
  }
  func.func @transform_1(%arg0: i32) -> i32 {
    %c0_i32 = arith.constant 0 : i32
    %c0_i32_0 = arith.constant 0 : i32
    return %c0_i32 : i32
  }
  func.func @transform_2(%arg0: i32) -> i32 {
    %c0_i32 = arith.constant 0 : i32
    %c0_i32_0 = arith.constant 0 : i32
    return %c0_i32 : i32
  }
  func.func @transform_3(%arg0: i32) -> i32 {
    %c0_i32 = arith.constant 0 : i32
    %c0_i32_0 = arith.constant 0 : i32
    return %c0_i32 : i32
  }
  func.func @transform_4(%arg0: i32) -> i32 {
    %c0_i32 = arith.constant 0 : i32
    %c0_i32_0 = arith.constant 0 : i32
    return %c0_i32 : i32
  }
  func.func @transform_5(%arg0: i32) -> i32 {
    %c0_i32 = arith.constant 0 : i32
    %c0_i32_0 = arith.constant 0 : i32
    return %c0_i32 : i32
  }
  func.func @transform_6(%arg0: i32) -> (i32, i32, i32) {
    %c0_i32 = arith.constant 0 : i32
    %c0_i32_0 = arith.constant 0 : i32
    %c0_i32_1 = arith.constant 0 : i32
    return %arg0, %c0_i32, %c0_i32_0 : i32, i32, i32
  }
}

</mosaic_0001>

<llo_original>
// kernel: gffn_forward.1
$region0: #{gffn_forward.1}
  #allocation0 [shape = 'u32[]', space=smem, size = 0x4, offset = 0x4, fixed_abs, tag = 'smem constant byte address 0x4 - core index']
  #allocation1 [shape = 'u32[72,128]{1,0:T(1,128)}', space=vmem, size = 0x9000, scoped, tag = 'internal scratch']
  %s0 = inlined_call_operand.vmem [shape: f32[2,4,384], index: 0, kind: input, shape index: {}]
  %s1 = inlined_call_operand.vmem [shape: f32[16], index: 1, kind: input, shape index: {}]
  %s2 = inlined_call_operand.vmem [shape: f32[36], index: 2, kind: input, shape index: {}]
  %s3 = inlined_call_operand.vmem [shape: f32[16], index: 3, kind: input, shape index: {}]
  %s4 = inlined_call_operand.vmem [shape: f32[36], index: 4, kind: input, shape index: {}]
  %s5 = inlined_call_operand.vmem [shape: f32[16], index: 5, kind: input, shape index: {}]
  %s6 = inlined_call_operand.vmem [shape: f32[2,4,384], index: 6, kind: output, shape index: {}]
  %s7 = sld [smem:[#allocation0]]
  $region77: #{gffn_forward.1} parent=0
    _
  %s9 = ssub.s32 1, %s7
  %s10 = scalar_select 0, %s9, %s7
  $region1: #{gffn_forward.1} parent=0
    #allocation2 [shape = 'u8[512]{0}', space=smem, size = 0x200, scoped, tag = 'input window, operand 1, single buffered']
    #allocation3 [shape = 's32[2]{0}', space=sflag, size = 0x8, scoped, tag = 'scoped memory for gffn_forward.1']
    #allocation4 [shape = 'u8[512]{0}', space=smem, size = 0x200, scoped, tag = 'input window, operand 2, single buffered']
    #allocation5 [shape = 's32[1]{0}', space=sflag, size = 0x4, scoped, tag = 'scoped memory for gffn_forward.1']
    #allocation6 [shape = 'u8[512]{0}', space=smem, size = 0x200, scoped, tag = 'input window, operand 3, single buffered']
    #allocation7 [shape = 'u8[512]{0}', space=smem, size = 0x200, scoped, tag = 'input window, operand 4, single buffered']
    #allocation8 [shape = 's32[1]{0}', space=sflag, size = 0x4, scoped, tag = 'scoped memory for gffn_forward.1']
    #allocation9 [shape = 'u8[512]{0}', space=smem, size = 0x200, scoped, tag = 'input window, operand 5, single buffered']
    %11 = vsyncpa [#allocation3], 0
    %12 = vsyncpa [#allocation5], 0
    %13 = vsyncpa [#allocation8], 0
    loop: start=0, step=1, limit=4
    $region2: #{gffn_forward.1} parent=1 // loop_pre_header
      _
    $region3: #{gffn_forward.1} parent=1 // loop_header
      %s15 = sphi 0, %s19
      %p16 = scmp.ge.s32.totalorder %s15, 4
      %s25 = sphi 0, %s27
      %s28 = sphi 0, %s25
      %s29 = sphi 0, %s28
      %s45 = sphi 0, %s29
      %s49 = sphi 0, %s49
      %s51 = sphi 0, %s49
      %s52 = sphi 0, %s51
      %s66 = sphi 0, %s52
      %s70 = sphi 0, %s70
      %s72 = sphi 0, %s70
      %s73 = sphi 0, %s72
      %s87 = sphi 0, %s73
      %s91 = sphi 0, %s91
      %s93 = sphi 0, %s91
      %s94 = sphi 0, %s93
      %s108 = sphi 0, %s94
      %s112 = sphi 0, %s112
      %s114 = sphi 0, %s112
      %s115 = sphi 0, %s114
      %s129 = sphi 0, %s115
      %s133 = sphi 0, %s133
      %s135 = sphi 0, %s133
      %s136 = sphi 0, %s135
      %s150 = sphi 0, %s136
      %s156 = sphi 0, %s158
      %s159 = sphi 0, %s156
      %s160 = sphi 0, %s159
      %s176 = sphi 0, %s160
    $region4: #{gffn_forward.1} parent=1 // loop_header_branch
      %18 = sbr.rel (%p16) target = $region8
    $region5: #{gffn_forward.1} parent=1 // loop_body
      %s20 = ssub.s32 %s15, 1
      %s21 = ssub.s32 %s15, 2
      %s22 = sadd.s32 %s15, 1
      %s23 = ssub.s32 %s15, %s22
      %p24 = scmp.eq.s32.totalorder %s23, 0
      %s26 = sadd.s32 %s25, 1
      %s27 = scalar_select %p24, %s25, %s26
      %p30 = pneg %p24
      %p31 = scmp.eq.s32.totalorder %s15, 1
      %p32 = por %p30, %p31
      %p33 = scmp.ne.s32.totalorder %s25, %s28
      %p34 = scmp.eq.s32.totalorder %s15, 0
      %p35 = por %p33, %p34
      %p36 = scmp.ne.s32.totalorder %s25, %s28
      %p37 = scmp.eq.s32.totalorder %s20, 1
      %p38 = por %p36, %p37
      %p39 = scmp.ne.s32.totalorder %s28, %s29
      %p40 = scmp.eq.s32.totalorder %s20, 0
      %p41 = por %p39, %p40
      %p42 = scmp.ne.s32.totalorder %s28, %s29
      %p43 = scmp.eq.s32.totalorder %s21, 1
      %p44 = por %p42, %p43
      %p46 = scmp.ne.s32.totalorder %s29, %s45
      %p47 = scmp.eq.s32.totalorder %s21, 0
      %p48 = por %p46, %p47
      %s50 = sadd.s32 %s49, 1
      %p53 = scmp.eq.s32.totalorder %s15, 1
      %p54 = scmp.ne.s32.totalorder %s49, %s51
      %p55 = scmp.eq.s32.totalorder %s15, 0
      %p56 = por %p54, %p55
      %p57 = scmp.ne.s32.totalorder %s49, %s51
      %p58 = scmp.eq.s32.totalorder %s20, 1
      %p59 = por %p57, %p58
      %p60 = scmp.ne.s32.totalorder %s51, %s52
      %p61 = scmp.eq.s32.totalorder %s20, 0
      %p62 = por %p60, %p61
      %p63 = scmp.ne.s32.totalorder %s51, %s52
      %p64 = scmp.eq.s32.totalorder %s21, 1
      %p65 = por %p63, %p64
      %p67 = scmp.ne.s32.totalorder %s52, %s66
      %p68 = scmp.eq.s32.totalorder %s21, 0
      %p69 = por %p67, %p68
      %s71 = sadd.s32 %s70, 1
      %p74 = scmp.eq.s32.totalorder %s15, 1
      %p75 = scmp.ne.s32.totalorder %s70, %s72
      %p76 = scmp.eq.s32.totalorder %s15, 0
      %p77 = por %p75, %p76
      %p78 = scmp.ne.s32.totalorder %s70, %s72
      %p79 = scmp.eq.s32.totalorder %s20, 1
      %p80 = por %p78, %p79
      %p81 = scmp.ne.s32.totalorder %s72, %s73
      %p82 = scmp.eq.s32.totalorder %s20, 0
      %p83 = por %p81, %p82
      %p84 = scmp.ne.s32.totalorder %s72, %s73
      %p85 = scmp.eq.s32.totalorder %s21, 1
      %p86 = por %p84, %p85
      %p88 = scmp.ne.s32.totalorder %s73, %s87
      %p89 = scmp.eq.s32.totalorder %s21, 0
      %p90 = por %p88, %p89
      %s92 = sadd.s32 %s91, 1
      %p95 = scmp.eq.s32.totalorder %s15, 1
      %p96 = scmp.ne.s32.totalorder %s91, %s93
      %p97 = scmp.eq.s32.totalorder %s15, 0
      %p98 = por %p96, %p97
      %p99 = scmp.ne.s32.totalorder %s91, %s93
      %p100 = scmp.eq.s32.totalorder %s20, 1
      %p101 = por %p99, %p100
      %p102 = scmp.ne.s32.totalorder %s93, %s94
      %p103 = scmp.eq.s32.totalorder %s20, 0
      %p104 = por %p102, %p103
      %p105 = scmp.ne.s32.totalorder %s93, %s94
      %p106 = scmp.eq.s32.totalorder %s21, 1
      %p107 = por %p105, %p106
      %p109 = scmp.ne.s32.totalorder %s94, %s108
      %p110 = scmp.eq.s32.totalorder %s21, 0
      %p111 = por %p109, %p110
      %s113 = sadd.s32 %s112, 1
      %p116 = scmp.eq.s32.totalorder %s15, 1
      %p117 = scmp.ne.s32.totalorder %s112, %s114
      %p118 = scmp.eq.s32.totalorder %s15, 0
      %p119 = por %p117, %p118
      %p120 = scmp.ne.s32.totalorder %s112, %s114
      %p121 = scmp.eq.s32.totalorder %s20, 1
      %p122 = por %p120, %p121
      %p123 = scmp.ne.s32.totalorder %s114, %s115
      %p124 = scmp.eq.s32.totalorder %s20, 0
      %p125 = por %p123, %p124
      %p126 = scmp.ne.s32.totalorder %s114, %s115
      %p127 = scmp.eq.s32.totalorder %s21, 1
      %p128 = por %p126, %p127
      %p130 = scmp.ne.s32.totalorder %s115, %s129
      %p131 = scmp.eq.s32.totalorder %s21, 0
      %p132 = por %p130, %p131
      %s134 = sadd.s32 %s133, 1
      %p137 = scmp.eq.s32.totalorder %s15, 1
      %p138 = scmp.ne.s32.totalorder %s133, %s135
      %p139 = scmp.eq.s32.totalorder %s15, 0
      %p140 = por %p138, %p139
      %p141 = scmp.ne.s32.totalorder %s133, %s135
      %p142 = scmp.eq.s32.totalorder %s20, 1
      %p143 = por %p141, %p142
      %p144 = scmp.ne.s32.totalorder %s135, %s136
      %p145 = scmp.eq.s32.totalorder %s20, 0
      %p146 = por %p144, %p145
      %p147 = scmp.ne.s32.totalorder %s135, %s136
      %p148 = scmp.eq.s32.totalorder %s21, 1
      %p149 = por %p147, %p148
      %p151 = scmp.ne.s32.totalorder %s136, %s150
      %p152 = scmp.eq.s32.totalorder %s21, 0
      %p153 = por %p151, %p152
      %s154 = ssub.s32 %s15, %s22
      %p155 = scmp.eq.s32.totalorder %s154, 0
      %s157 = sadd.s32 %s156, 1
      %s158 = scalar_select %p155, %s156, %s157
      %p161 = pneg %p155
      %p162 = scmp.eq.s32.totalorder %s15, 1
      %p163 = por %p161, %p162
      %p164 = scmp.ne.s32.totalorder %s156, %s159
      %p165 = scmp.eq.s32.totalorder %s15, 0
      %p166 = por %p164, %p165
      %p167 = scmp.ne.s32.totalorder %s156, %s159
      %p168 = scmp.eq.s32.totalorder %s20, 1
      %p169 = por %p167, %p168
      %p170 = scmp.ne.s32.totalorder %s159, %s160
      %p171 = scmp.eq.s32.totalorder %s20, 0
      %p172 = por %p170, %p171
      %p173 = scmp.ne.s32.totalorder %s159, %s160
      %p174 = scmp.eq.s32.totalorder %s21, 1
      %p175 = por %p173, %p174
      %p177 = scmp.ne.s32.totalorder %s160, %s176
      %p178 = scmp.eq.s32.totalorder %s21, 0
      %p179 = por %p177, %p178
      %p180 = scmp.le.s32.totalorder 1, %s15
      %p181 = scmp.lt.s32.totalorder %s15, 3
      %p182 = pnand %p180, %p181
      %p183 = pneg %p182
      // Predicated region
      $region9: #{gffn_forward.1} parent=5 // pred_check
        _
      $region10: #{gffn_forward.1} parent=5 // pred_check_branch
        %185 = sbr.rel (%p182) target = $region12
      $region11: #{gffn_forward.1} parent=5 // pred_region
        %s186 = ssub.s32 %s15, 1
        // Predicated region
        $region13: #{gffn_forward.1} parent=11 // pred_check
          %p187 = pneg %p62
        $region14: #{gffn_forward.1} parent=11 // pred_check_branch
          %189 = sbr.rel (%p187) target = $region16
        $region15: #{gffn_forward.1} parent=11 // pred_region
          %191 = vsyncadd [#allocation3], 0
          %s193 = sshll.u32 %s1, 4
          %s194 = int_to_ptr.vmem [resolvable:$true] %s193
          %196 = dma.vmem_to_smem %s194, 16, [#allocation2], [#allocation3]
        $region16: #{gffn_forward.1} parent=11 // pred_fallthru
          _
        // Predicated region
        $region17: #{gffn_forward.1} parent=11 // pred_check
          %p197 = pneg %p83
        $region18: #{gffn_forward.1} parent=11 // pred_check_branch
          %199 = sbr.rel (%p197) target = $region20
        $region19: #{gffn_forward.1} parent=11 // pred_region
          %201 = vsyncadd [#allocation5], 0
          %s203 = sshll.u32 %s2, 4
          %s204 = int_to_ptr.vmem [resolvable:$true] %s203
          %206 = dma.vmem_to_smem %s204, 16, [#allocation4], [#allocation5]
        $region20: #{gffn_forward.1} parent=11 // pred_fallthru
          _
        // Predicated region
        $region21: #{gffn_forward.1} parent=11 // pred_check
          %p207 = pneg %p104
        $region22: #{gffn_forward.1} parent=11 // pred_check_branch
          %209 = sbr.rel (%p207) target = $region24
        $region23: #{gffn_forward.1} parent=11 // pred_region
          %211 = vsyncadd [#allocation5], 0
          %s213 = sshll.u32 %s3, 4
          %s214 = int_to_ptr.vmem [resolvable:$true] %s213
          %216 = dma.vmem_to_smem %s214, 16, [#allocation6], [#allocation5]
        $region24: #{gffn_forward.1} parent=11 // pred_fallthru
          _
        // Predicated region
        $region25: #{gffn_forward.1} parent=11 // pred_check
          %p217 = pneg %p125
        $region26: #{gffn_forward.1} parent=11 // pred_check_branch
          %219 = sbr.rel (%p217) target = $region28
        $region27: #{gffn_forward.1} parent=11 // pred_region
          %221 = vsyncadd [#allocation8], 0
          %s223 = sshll.u32 %s4, 4
          %s224 = int_to_ptr.vmem [resolvable:$true] %s223
          %226 = dma.vmem_to_smem %s224, 16, [#allocation7], [#allocation8]
        $region28: #{gffn_forward.1} parent=11 // pred_fallthru
          _
        // Predicated region
        $region29: #{gffn_forward.1} parent=11 // pred_check
          %p227 = pneg %p146
        $region30: #{gffn_forward.1} parent=11 // pred_check_branch
          %229 = sbr.rel (%p227) target = $region32
        $region31: #{gffn_forward.1} parent=11 // pred_region
          %231 = vsyncadd [#allocation8], 0
          %s233 = sshll.u32 %s5, 4
          %s234 = int_to_ptr.vmem [resolvable:$true] %s233
          %236 = dma.vmem_to_smem %s234, 16, [#allocation9], [#allocation8]
        $region32: #{gffn_forward.1} parent=11 // pred_fallthru
          _
      $region12: #{gffn_forward.1} parent=5 // pred_fallthru
        _
      %p237 = scmp.lt.s32.totalorder %s15, 2
      // Predicated region
      $region33: #{gffn_forward.1} parent=5 // pred_check
        %p238 = pneg %p237
      $region34: #{gffn_forward.1} parent=5 // pred_check_branch
        %240 = sbr.rel (%p238) target = $region36
      $region35: #{gffn_forward.1} parent=5 // pred_region
        // Predicated region
        $region37: #{gffn_forward.1} parent=35 // pred_check
          %p241 = pneg %p35
        $region38: #{gffn_forward.1} parent=35 // pred_check_branch
          %243 = sbr.rel (%p241) target = $region40
        $region39: #{gffn_forward.1} parent=35 // pred_region
          %p244 = scmp.lt.s32.totalorder %s15, 1
          %s245 = scalar_select %p244, %s15, 1
          %s246 = smul.addr %s245, 3
          %s247 = smul.addr %s246, 4
          %s248 = scalar_lea.vmem %s0, %s247
        $region40: #{gffn_forward.1} parent=35 // pred_fallthru
          _
      $region36: #{gffn_forward.1} parent=5 // pred_fallthru
        _
      %p249 = scmp.le.s32.totalorder 1, %s15
      %p250 = scmp.lt.s32.totalorder %s15, 3
      %p251 = pnand %p249, %p250
      %p252 = pneg %p251
      // Predicated region
      $region41: #{gffn_forward.1} parent=5 // pred_check
        _
      $region42: #{gffn_forward.1} parent=5 // pred_check_branch
        %254 = sbr.rel (%p251) target = $region44
      $region43: #{gffn_forward.1} parent=5 // pred_region
        %s255 = ssub.s32 %s15, 1
        // Predicated region
        $region45: #{gffn_forward.1} parent=43 // pred_check
          %p256 = pneg %p62
        $region46: #{gffn_forward.1} parent=43 // pred_check_branch
          %258 = sbr.rel (%p256) target = $region48
        $region47: #{gffn_forward.1} parent=43 // pred_region
          %260 = dma.done [#allocation3], 16
        $region48: #{gffn_forward.1} parent=43 // pred_fallthru
          _
        // Predicated region
        $region49: #{gffn_forward.1} parent=43 // pred_check
          %p261 = pneg %p83
        $region50: #{gffn_forward.1} parent=43 // pred_check_branch
          %263 = sbr.rel (%p261) target = $region52
        $region51: #{gffn_forward.1} parent=43 // pred_region
          %265 = dma.done [#allocation5], 16
        $region52: #{gffn_forward.1} parent=43 // pred_fallthru
          _
        // Predicated region
        $region53: #{gffn_forward.1} parent=43 // pred_check
          %p266 = pneg %p104
        $region54: #{gffn_forward.1} parent=43 // pred_check_branch
          %268 = sbr.rel (%p266) target = $region56
        $region55: #{gffn_forward.1} parent=43 // pred_region
          %270 = dma.done [#allocation5], 16
        $region56: #{gffn_forward.1} parent=43 // pred_fallthru
          _
        // Predicated region
        $region57: #{gffn_forward.1} parent=43 // pred_check
          %p271 = pneg %p125
        $region58: #{gffn_forward.1} parent=43 // pred_check_branch
          %273 = sbr.rel (%p271) target = $region60
        $region59: #{gffn_forward.1} parent=43 // pred_region
          %275 = dma.done [#allocation8], 16
        $region60: #{gffn_forward.1} parent=43 // pred_fallthru
          _
        // Predicated region
        $region61: #{gffn_forward.1} parent=43 // pred_check
          %p276 = pneg %p146
        $region62: #{gffn_forward.1} parent=43 // pred_check_branch
          %278 = sbr.rel (%p276) target = $region64
        $region63: #{gffn_forward.1} parent=43 // pred_region
          %280 = dma.done [#allocation8], 16
        $region64: #{gffn_forward.1} parent=43 // pred_fallthru
          _
        %281 = sfence
        %p282 = scmp.lt.s32.totalorder %s20, 1
        %s283 = scalar_select %p282, %s20, 1
        %s284 = smul.addr %s283, 3
        %s285 = smul.addr %s284, 4
        %s286 = scalar_lea.vmem %s0, %s285
        %p287 = pneg %p41
        %p288 = pneg %p38
        %p289 = pneg %p62
        %p290 = pneg %p59
        %p291 = pneg %p83
        %p292 = pneg %p80
        %p293 = pneg %p104
        %p294 = pneg %p101
        %p295 = pneg %p125
        %p296 = pneg %p122
        %p297 = pneg %p146
        %p298 = pneg %p143
        %p299 = pneg %p172
        %p300 = pneg %p169
        %p301 = scmp.lt.s32.totalorder %s20, 1
        %s302 = scalar_select %p301, %s20, 1
        %s303 = smul.addr %s302, 3
        %s304 = smul.addr %s303, 4
        %s305 = scalar_lea.vmem %s6, %s304
        %p306 = scmp.lt.s32.totalorder %s20, 1
        %s307 = scalar_select %p306, %s20, 1
        %s308 = smul.addr %s307, 3
        %s309 = smul.addr %s308, 4
        %s310 = scalar_lea.vmem %s0, %s309
        %p311 = scmp.lt.s32.totalorder %s20, 1
        %s312 = scalar_select %p311, %s20, 1
        %s313 = smul.addr %s312, 3
        %s314 = smul.addr %s313, 4
        %s315 = scalar_lea.vmem %s6, %s314
        %v316 = vld [vmem:[%s310] sm:$0xff]
        %v317 = vld [vmem:[%s310 + $0x8] sm:$0xf]
        %s318 = sld [smem:[#allocation2]]
        %v319 = vstv %s318
        %v320 = vmul.f32 %v316, %v319
        %v321 = vmul.f32 %v317, %v319
        %s322 = sld [smem:[#allocation2 + $0x4]]
        %v323 = vstv %s322
        %v324 = vmul.f32 %v316, %v323
        %v325 = vmul.f32 %v317, %v323
        %v328 = vrot.slane %v324, 5
        %v329 = vrot.slane %v328, 4
        %v330 = vrot.slane %v325, 5
        %v331 = vrot.slane %v330, 4
        %v334 = vadd.f32 %v320, %v329
        %v335 = vadd.f32 %v321, %v331
        %s336 = sld [smem:[#allocation2 + $0x8]]
        %v337 = vstv %s336
        %v338 = vmul.f32 %v316, %v337
        %v339 = vmul.f32 %v317, %v337
        %v342 = vrot.slane %v338, 6
        %v343 = vrot.slane %v342, 4
        %v344 = vrot.slane %v339, 6
        %v345 = vrot.slane %v344, 4
        %v348 = vadd.f32 %v334, %v343
        %v349 = vadd.f32 %v335, %v345
        %s350 = sld [smem:[#allocation2 + $0xc]]
        %v351 = vstv %s350
        %v352 = vmul.f32 %v316, %v351
        %v353 = vmul.f32 %v317, %v351
        %v356 = vrot.slane %v352, 7
        %v357 = vrot.slane %v356, 4
        %v358 = vrot.slane %v353, 7
        %v359 = vrot.slane %v358, 4
        %v362 = vadd.f32 %v348, %v357
        %v363 = vadd.f32 %v349, %v359
        %s364 = sld [smem:[#allocation4 + $0x10]]
        %v365 = vstv %s364
        %v366 = vmul.f32 %v362, %v365
        %v367 = vmul.f32 %v363, %v365
        %v370 = vperm.slane %v362, 0
        %v371 = vperm.slane %v362, 4
        %v372 = vperm.slane %v363, 0
        %376 = vrot.lane.b32.xlu0 %v370, 19
        %v377 = vpop.permute.xlu0 %376
        %378 = vrot.lane.b32.xlu0 %v371, 19
        %v379 = vpop.permute.xlu0 %378
        %380 = vrot.lane.b32.xlu0 %v372, 19
        %v381 = vpop.permute.xlu0 %380
        %v382 = vlaneseq
        %v383 = vand.u32 %v382, 127
        %vm384 = vcmp.lt.s32.totalorder %v383, 19
        %v385 = vsel %vm384, %v379, %v381
        %v386 = vsel %vm384, %v377, %v379
        %v387 = vsel %vm384, %v381, %v377
        %s388 = sld [smem:[#allocation4]]
        %v389 = vstv %s388
        %v390 = vmul.f32 %v387, %v389
        %v391 = vmul.f32 %v386, %v389
        %v392 = vmul.f32 %v385, %v389
        %v395 = vrot.slane %v391, 4
        %vm396 = vcmask 1043456
        %v397 = vsel %vm396, %v390, %v395
        %v399 = vadd.f32 %v366, %v397
        %v400 = vadd.f32 %v367, %v392
        %401 = vrot.lane.b32.xlu0 %v370, 18
        %v402 = vpop.permute.xlu0 %401
        %403 = vrot.lane.b32.xlu0 %v371, 18
        %v404 = vpop.permute.xlu0 %403
        %405 = vrot.lane.b32.xlu0 %v372, 18
        %v406 = vpop.permute.xlu0 %405
        %vm407 = vcmp.lt.s32.totalorder %v383, 18
        %v408 = vsel %vm407, %v404, %v406
        %v409 = vsel %vm407, %v402, %v404
        %v410 = vsel %vm407, %v406, %v402
        %s411 = sld [smem:[#allocation4 + $0x4]]
        %v412 = vstv %s411
        %v413 = vmul.f32 %v410, %v412
        %v414 = vmul.f32 %v409, %v412
        %v415 = vmul.f32 %v408, %v412
        %v418 = vrot.slane %v414, 4
        %v419 = vsel %vm396, %v413, %v418
        %v421 = vadd.f32 %v399, %v419
        %v422 = vadd.f32 %v400, %v415
        %423 = vrot.lane.b32.xlu0 %v370, 17
        %v424 = vpop.permute.xlu0 %423
        %425 = vrot.lane.b32.xlu0 %v371, 17
        %v426 = vpop.permute.xlu0 %425
        %427 = vrot.lane.b32.xlu0 %v372, 17
        %v428 = vpop.permute.xlu0 %427
        %vm429 = vcmp.lt.s32.totalorder %v383, 17
        %v430 = vsel %vm429, %v426, %v428
        %v431 = vsel %vm429, %v424, %v426
        %v432 = vsel %vm429, %v428, %v424
        %s433 = sld [smem:[#allocation4 + $0x8]]
        %v434 = vstv %s433
        %v435 = vmul.f32 %v432, %v434
        %v436 = vmul.f32 %v431, %v434
        %v437 = vmul.f32 %v430, %v434
        %v440 = vrot.slane %v436, 4
        %v441 = vsel %vm396, %v435, %v440
        %v443 = vadd.f32 %v421, %v441
        %v444 = vadd.f32 %v422, %v437
        %445 = vrot.lane.b32.xlu0 %v370, 1
        %v446 = vpop.permute.xlu0 %445
        %447 = vrot.lane.b32.xlu0 %v371, 1
        %v448 = vpop.permute.xlu0 %447
        %449 = vrot.lane.b32.xlu0 %v372, 1
        %v450 = vpop.permute.xlu0 %449
        %vm451 = vcmp.lt.s32.totalorder %v383, 1
        %v452 = vsel %vm451, %v448, %v450
        %v453 = vsel %vm451, %v446, %v448
        %v454 = vsel %vm451, %v450, %v446
        %s455 = sld [smem:[#allocation4 + $0xc]]
        %v456 = vstv %s455
        %v457 = vmul.f32 %v454, %v456
        %v458 = vmul.f32 %v453, %v456
        %v459 = vmul.f32 %v452, %v456
        %v462 = vrot.slane %v458, 4
        %v463 = vsel %vm396, %v457, %v462
        %v465 = vadd.f32 %v443, %v463
        %v466 = vadd.f32 %v444, %v459
        %467 = vrot.lane.b32.xlu0 %v370, 127
        %v468 = vpop.permute.xlu0 %467
        %469 = vrot.lane.b32.xlu0 %v371, 127
        %v470 = vpop.permute.xlu0 %469
        %471 = vrot.lane.b32.xlu0 %v372, 127
        %v472 = vpop.permute.xlu0 %471
        %vm473 = vcmp.lt.s32.totalorder %v383, 127
        %v474 = vsel %vm473, %v470, %v472
        %v475 = vsel %vm473, %v468, %v470
        %v476 = vsel %vm473, %v472, %v468
        %s477 = sld [smem:[#allocation4 + $0x14]]
        %v478 = vstv %s477
        %v479 = vmul.f32 %v475, %v478
        %v480 = vmul.f32 %v474, %v478
        %v481 = vmul.f32 %v476, %v478
        %v484 = vrot.slane %v480, 4
        %v485 = vsel %vm396, %v479, %v484
        %v487 = vadd.f32 %v465, %v485
        %v488 = vadd.f32 %v466, %v481
        %489 = vrot.lane.b32.xlu0 %v370, 111
        %v490 = vpop.permute.xlu0 %489
        %491 = vrot.lane.b32.xlu0 %v371, 111
        %v492 = vpop.permute.xlu0 %491
        %493 = vrot.lane.b32.xlu0 %v372, 111
        %v494 = vpop.permute.xlu0 %493
        %vm495 = vcmp.lt.s32.totalorder %v383, 111
        %v496 = vsel %vm495, %v492, %v494
        %v497 = vsel %vm495, %v490, %v492
        %v498 = vsel %vm495, %v494, %v490
        %s499 = sld [smem:[#allocation4 + $0x18]]
        %v500 = vstv %s499
        %v501 = vmul.f32 %v497, %v500
        %v502 = vmul.f32 %v496, %v500
        %v503 = vmul.f32 %v498, %v500
        %v506 = vrot.slane %v502, 4
        %v507 = vsel %vm396, %v501, %v506
        %v509 = vadd.f32 %v487, %v507
        %v510 = vadd.f32 %v488, %v503
        %511 = vrot.lane.b32.xlu0 %v370, 110
        %v512 = vpop.permute.xlu0 %511
        %513 = vrot.lane.b32.xlu0 %v371, 110
        %v514 = vpop.permute.xlu0 %513
        %515 = vrot.lane.b32.xlu0 %v372, 110
        %v516 = vpop.permute.xlu0 %515
        %vm517 = vcmp.lt.s32.totalorder %v383, 110
        %v518 = vsel %vm517, %v514, %v516
        %v519 = vsel %vm517, %v512, %v514
        %v520 = vsel %vm517, %v516, %v512
        %s521 = sld [smem:[#allocation4 + $0x1c]]
        %v522 = vstv %s521
        %v523 = vmul.f32 %v519, %v522
        %v524 = vmul.f32 %v518, %v522
        %v525 = vmul.f32 %v520, %v522
        %v528 = vrot.slane %v524, 4
        %v529 = vsel %vm396, %v523, %v528
        %v531 = vadd.f32 %v509, %v529
        %v532 = vadd.f32 %v510, %v525
        %533 = vrot.lane.b32.xlu0 %v370, 109
        %v534 = vpop.permute.xlu0 %533
        %535 = vrot.lane.b32.xlu0 %v371, 109
        %v536 = vpop.permute.xlu0 %535
        %537 = vrot.lane.b32.xlu0 %v372, 109
        %v538 = vpop.permute.xlu0 %537
        %vm539 = vcmp.lt.s32.totalorder %v383, 109
        %v540 = vsel %vm539, %v536, %v538
        %v541 = vsel %vm539, %v534, %v536
        %v542 = vsel %vm539, %v538, %v534
        %s543 = sld [smem:[#allocation4 + $0x20]]
        %v544 = vstv %s543
        %v545 = vmul.f32 %v541, %v544
        %v546 = vmul.f32 %v540, %v544
        %v547 = vmul.f32 %v542, %v544
        %v550 = vrot.slane %v546, 4
        %v551 = vsel %vm396, %v545, %v550
        %v553 = vadd.f32 %v531, %v551
        %v554 = vadd.f32 %v532, %v547
        %s555 = sld [smem:[#allocation6]]
        %v556 = vstv %s555
        %v557 = vmul.f32 %v316, %v556
        %v558 = vmul.f32 %v317, %v556
        %s559 = sld [smem:[#allocation6 + $0x4]]
        %v560 = vstv %s559
        %v561 = vmul.f32 %v316, %v560
        %v562 = vmul.f32 %v317, %v560
        %v565 = vrot.slane %v561, 5
        %v566 = vrot.slane %v565, 4
        %v567 = vrot.slane %v562, 5
        %v568 = vrot.slane %v567, 4
        %v571 = vadd.f32 %v557, %v566
        %v572 = vadd.f32 %v558, %v568
        %s573 = sld [smem:[#allocation6 + $0x8]]
        %v574 = vstv %s573
        %v575 = vmul.f32 %v316, %v574
        %v576 = vmul.f32 %v317, %v574
        %v579 = vrot.slane %v575, 6
        %v580 = vrot.slane %v579, 4
        %v581 = vrot.slane %v576, 6
        %v582 = vrot.slane %v581, 4
        %v585 = vadd.f32 %v571, %v580
        %v586 = vadd.f32 %v572, %v582
        %s587 = sld [smem:[#allocation6 + $0xc]]
        %v588 = vstv %s587
        %v589 = vmul.f32 %v316, %v588
        %v590 = vmul.f32 %v317, %v588
        %v593 = vrot.slane %v589, 7
        %v594 = vrot.slane %v593, 4
        %v595 = vrot.slane %v590, 7
        %v596 = vrot.slane %v595, 4
        %v599 = vadd.f32 %v585, %v594
        %v600 = vadd.f32 %v586, %v596
        %s601 = sld [smem:[#allocation7 + $0x10]]
        %v602 = vstv %s601
        %v603 = vmul.f32 %v599, %v602
        %v604 = vmul.f32 %v600, %v602
        %v607 = vperm.slane %v599, 0
        %v608 = vperm.slane %v599, 4
        %v609 = vperm.slane %v600, 0
        %613 = vrot.lane.b32.xlu0 %v607, 19
        %v614 = vpop.permute.xlu0 %613
        %615 = vrot.lane.b32.xlu0 %v608, 19
        %v616 = vpop.permute.xlu0 %615
        %617 = vrot.lane.b32.xlu0 %v609, 19
        %v618 = vpop.permute.xlu0 %617
        %v619 = vsel %vm384, %v616, %v618
        %v620 = vsel %vm384, %v614, %v616
        %v621 = vsel %vm384, %v618, %v614
        %s622 = sld [smem:[#allocation7]]
        %v623 = vstv %s622
        %v624 = vmul.f32 %v621, %v623
        %v625 = vmul.f32 %v620, %v623
        %v626 = vmul.f32 %v619, %v623
        %v629 = vrot.slane %v625, 4
        %v630 = vsel %vm396, %v624, %v629
        %v632 = vadd.f32 %v603, %v630
        %v633 = vadd.f32 %v604, %v626
        %634 = vrot.lane.b32.xlu0 %v607, 18
        %v635 = vpop.permute.xlu0 %634
        %636 = vrot.lane.b32.xlu0 %v608, 18
        %v637 = vpop.permute.xlu0 %636
        %638 = vrot.lane.b32.xlu0 %v609, 18
        %v639 = vpop.permute.xlu0 %638
        %v640 = vsel %vm407, %v637, %v639
        %v641 = vsel %vm407, %v635, %v637
        %v642 = vsel %vm407, %v639, %v635
        %s643 = sld [smem:[#allocation7 + $0x4]]
        %v644 = vstv %s643
        %v645 = vmul.f32 %v642, %v644
        %v646 = vmul.f32 %v641, %v644
        %v647 = vmul.f32 %v640, %v644
        %v650 = vrot.slane %v646, 4
        %v651 = vsel %vm396, %v645, %v650
        %v653 = vadd.f32 %v632, %v651
        %v654 = vadd.f32 %v633, %v647
        %655 = vrot.lane.b32.xlu0 %v607, 17
        %v656 = vpop.permute.xlu0 %655
        %657 = vrot.lane.b32.xlu0 %v608, 17
        %v658 = vpop.permute.xlu0 %657
        %659 = vrot.lane.b32.xlu0 %v609, 17
        %v660 = vpop.permute.xlu0 %659
        %v661 = vsel %vm429, %v658, %v660
        %v662 = vsel %vm429, %v656, %v658
        %v663 = vsel %vm429, %v660, %v656
        %s664 = sld [smem:[#allocation7 + $0x8]]
        %v665 = vstv %s664
        %v666 = vmul.f32 %v663, %v665
        %v667 = vmul.f32 %v662, %v665
        %v668 = vmul.f32 %v661, %v665
        %v671 = vrot.slane %v667, 4
        %v672 = vsel %vm396, %v666, %v671
        %v674 = vadd.f32 %v653, %v672
        %v675 = vadd.f32 %v654, %v668
        %676 = vrot.lane.b32.xlu0 %v607, 1
        %v677 = vpop.permute.xlu0 %676
        %678 = vrot.lane.b32.xlu0 %v608, 1
        %v679 = vpop.permute.xlu0 %678
        %680 = vrot.lane.b32.xlu0 %v609, 1
        %v681 = vpop.permute.xlu0 %680
        %v682 = vsel %vm451, %v679, %v681
        %v683 = vsel %vm451, %v677, %v679
        %v684 = vsel %vm451, %v681, %v677
        %s685 = sld [smem:[#allocation7 + $0xc]]
        %v686 = vstv %s685
        %v687 = vmul.f32 %v684, %v686
        %v688 = vmul.f32 %v683, %v686
        %v689 = vmul.f32 %v682, %v686
        %v692 = vrot.slane %v688, 4
        %v693 = vsel %vm396, %v687, %v692
        %v695 = vadd.f32 %v674, %v693
        %v696 = vadd.f32 %v675, %v689
        %697 = vrot.lane.b32.xlu0 %v607, 127
        %v698 = vpop.permute.xlu0 %697
        %699 = vrot.lane.b32.xlu0 %v608, 127
        %v700 = vpop.permute.xlu0 %699
        %701 = vrot.lane.b32.xlu0 %v609, 127
        %v702 = vpop.permute.xlu0 %701
        %v703 = vsel %vm473, %v700, %v702
        %v704 = vsel %vm473, %v698, %v700
        %v705 = vsel %vm473, %v702, %v698
        %s706 = sld [smem:[#allocation7 + $0x14]]
        %v707 = vstv %s706
        %v708 = vmul.f32 %v704, %v707
        %v709 = vmul.f32 %v703, %v707
        %v710 = vmul.f32 %v705, %v707
        %v713 = vrot.slane %v709, 4
        %v714 = vsel %vm396, %v708, %v713
        %v716 = vadd.f32 %v695, %v714
        %v717 = vadd.f32 %v696, %v710
        %718 = vrot.lane.b32.xlu0 %v607, 111
        %v719 = vpop.permute.xlu0 %718
        %720 = vrot.lane.b32.xlu0 %v608, 111
        %v721 = vpop.permute.xlu0 %720
        %722 = vrot.lane.b32.xlu0 %v609, 111
        %v723 = vpop.permute.xlu0 %722
        %v724 = vsel %vm495, %v721, %v723
        %v725 = vsel %vm495, %v719, %v721
        %v726 = vsel %vm495, %v723, %v719
        %s727 = sld [smem:[#allocation7 + $0x18]]
        %v728 = vstv %s727
        %v729 = vmul.f32 %v725, %v728
        %v730 = vmul.f32 %v724, %v728
        %v731 = vmul.f32 %v726, %v728
        %v734 = vrot.slane %v730, 4
        %v735 = vsel %vm396, %v729, %v734
        %v737 = vadd.f32 %v716, %v735
        %v738 = vadd.f32 %v717, %v731
        %739 = vrot.lane.b32.xlu0 %v607, 110
        %v740 = vpop.permute.xlu0 %739
        %741 = vrot.lane.b32.xlu0 %v608, 110
        %v742 = vpop.permute.xlu0 %741
        %743 = vrot.lane.b32.xlu0 %v609, 110
        %v744 = vpop.permute.xlu0 %743
        %v745 = vsel %vm517, %v742, %v744
        %v746 = vsel %vm517, %v740, %v742
        %v747 = vsel %vm517, %v744, %v740
        %s748 = sld [smem:[#allocation7 + $0x1c]]
        %v749 = vstv %s748
        %v750 = vmul.f32 %v746, %v749
        %v751 = vmul.f32 %v745, %v749
        %v752 = vmul.f32 %v747, %v749
        %v755 = vrot.slane %v751, 4
        %v756 = vsel %vm396, %v750, %v755
        %v758 = vadd.f32 %v737, %v756
        %v759 = vadd.f32 %v738, %v752
        %760 = vrot.lane.b32.xlu0 %v607, 109
        %v761 = vpop.permute.xlu0 %760
        %762 = vrot.lane.b32.xlu0 %v608, 109
        %v763 = vpop.permute.xlu0 %762
        %764 = vrot.lane.b32.xlu0 %v609, 109
        %v765 = vpop.permute.xlu0 %764
        %v766 = vsel %vm539, %v763, %v765
        %v767 = vsel %vm539, %v761, %v763
        %v768 = vsel %vm539, %v765, %v761
        %s769 = sld [smem:[#allocation7 + $0x20]]
        %v770 = vstv %s769
        %v771 = vmul.f32 %v767, %v770
        %v772 = vmul.f32 %v766, %v770
        %v773 = vmul.f32 %v768, %v770
        %v776 = vrot.slane %v772, 4
        %v777 = vsel %vm396, %v771, %v776
        %v779 = vadd.f32 %v758, %v777
        %v780 = vadd.f32 %v759, %v773
        %v781 = vsub.f32 0.0, %v779
        %v782 = vsub.f32 0.0, %v780
        %v783 = vmul.f32 %v781, 1.442695
        %v784 = vpow.pop %v783
        %v785 = vmul.f32 %v782, 1.442695
        %v786 = vpow.pop %v785
        %v787 = vadd.f32 %v784, 1.0
        %v788 = vadd.f32 %v786, 1.0
        %v789 = vrcp.pop %v787
        %v790 = vmul.f32 %v787, %v789
        %v791 = vsub.f32 1.0, %v790
        %v792 = vmul.f32 %v789, %v791
        %v793 = vadd.f32 %v789, %v792
        %vm794 = vweird.f32 %v787
        %vm795 = vweird.f32 %v789
        %vm796 = vmor %vm794, %vm795
        %v797 = vsel %vm796, %v789, %v793
        %v798 = vand.u32 2147483647, %v787
        %vm799 = vcmp.eq.f32.partialorder %v798, 8.507059e+37
        %v800 = vand.u32 %v787, 2147483648
        %v801 = vor.u32 1.1754944e-38, %v800
        %v802 = vsel %vm799, %v801, %v797
        %v803 = vmul.f32 1.0, %v802
        %v804 = vrcp.pop %v788
        %v805 = vmul.f32 %v788, %v804
        %v806 = vsub.f32 1.0, %v805
        %v807 = vmul.f32 %v804, %v806
        %v808 = vadd.f32 %v804, %v807
        %vm809 = vweird.f32 %v788
        %vm810 = vweird.f32 %v804
        %vm811 = vmor %vm809, %vm810
        %v812 = vsel %vm811, %v804, %v808
        %v813 = vand.u32 2147483647, %v788
        %vm814 = vcmp.eq.f32.partialorder %v813, 8.507059e+37
        %v815 = vand.u32 %v788, 2147483648
        %v816 = vor.u32 1.1754944e-38, %v815
        %v817 = vsel %vm814, %v816, %v812
        %v818 = vmul.f32 1.0, %v817
        %v819 = vmul.f32 %v779, %v803
        %v820 = vmul.f32 %v780, %v818
        %v821 = vmul.f32 %v553, %v819
        %v822 = vmul.f32 %v554, %v820
        %s823 = sld [smem:[#allocation2 + $0x1]]
        %v824 = vstv %s823
        %v825 = vmul.f32 %v316, %v824
        %v826 = vmul.f32 %v317, %v824
        %s827 = sld [smem:[#allocation2 + $0x5]]
        %v828 = vstv %s827
        %v829 = vmul.f32 %v316, %v828
        %v830 = vmul.f32 %v317, %v828
        %v833 = vrot.slane %v829, 5
        %v834 = vrot.slane %v833, 4
        %v835 = vrot.slane %v830, 5
        %v836 = vrot.slane %v835, 4
        %v839 = vadd.f32 %v825, %v834
        %v840 = vadd.f32 %v826, %v836
        %s841 = sld [smem:[#allocation2 + $0x9]]
        %v842 = vstv %s841
        %v843 = vmul.f32 %v316, %v842
        %v844 = vmul.f32 %v317, %v842
        %v847 = vrot.slane %v843, 6
        %v848 = vrot.slane %v847, 4
        %v849 = vrot.slane %v844, 6
        %v850 = vrot.slane %v849, 4
        %v853 = vadd.f32 %v839, %v848
        %v854 = vadd.f32 %v840, %v850
        %s855 = sld [smem:[#allocation2 + $0xd]]
        %v856 = vstv %s855
        %v857 = vmul.f32 %v316, %v856
        %v858 = vmul.f32 %v317, %v856
        %v861 = vrot.slane %v857, 7
        %v862 = vrot.slane %v861, 4
        %v863 = vrot.slane %v858, 7
        %v864 = vrot.slane %v863, 4
        %v867 = vadd.f32 %v853, %v862
        %v868 = vadd.f32 %v854, %v864
        %s869 = sld [smem:[#allocation4 + $0x11]]
        %v870 = vstv %s869
        %v871 = vmul.f32 %v867, %v870
        %v872 = vmul.f32 %v868, %v870
        %v875 = vperm.slane %v867, 0
        %v876 = vperm.slane %v867, 4
        %v877 = vperm.slane %v868, 0
        %881 = vrot.lane.b32.xlu0 %v875, 19
        %v882 = vpop.permute.xlu0 %881
        %883 = vrot.lane.b32.xlu0 %v876, 19
        %v884 = vpop.permute.xlu0 %883
        %885 = vrot.lane.b32.xlu0 %v877, 19
        %v886 = vpop.permute.xlu0 %885
        %v887 = vsel %vm384, %v884, %v886
        %v888 = vsel %vm384, %v882, %v884
        %v889 = vsel %vm384, %v886, %v882
        %s890 = sld [smem:[#allocation4 + $0x1]]
        %v891 = vstv %s890
        %v892 = vmul.f32 %v889, %v891
        %v893 = vmul.f32 %v888, %v891
        %v894 = vmul.f32 %v887, %v891
        %v897 = vrot.slane %v893, 4
        %v898 = vsel %vm396, %v892, %v897
        %v900 = vadd.f32 %v871, %v898
        %v901 = vadd.f32 %v872, %v894
        %902 = vrot.lane.b32.xlu0 %v875, 18
        %v903 = vpop.permute.xlu0 %902
        %904 = vrot.lane.b32.xlu0 %v876, 18
        %v905 = vpop.permute.xlu0 %904
        %906 = vrot.lane.b32.xlu0 %v877, 18
        %v907 = vpop.permute.xlu0 %906
        %v908 = vsel %vm407, %v905, %v907
        %v909 = vsel %vm407, %v903, %v905
        %v910 = vsel %vm407, %v907, %v903
        %s911 = sld [smem:[#allocation4 + $0x5]]
        %v912 = vstv %s911
        %v913 = vmul.f32 %v910, %v912
        %v914 = vmul.f32 %v909, %v912
        %v915 = vmul.f32 %v908, %v912
        %v918 = vrot.slane %v914, 4
        %v919 = vsel %vm396, %v913, %v918
        %v921 = vadd.f32 %v900, %v919
        %v922 = vadd.f32 %v901, %v915
        %923 = vrot.lane.b32.xlu0 %v875, 17
        %v924 = vpop.permute.xlu0 %923
        %925 = vrot.lane.b32.xlu0 %v876, 17
        %v926 = vpop.permute.xlu0 %925
        %927 = vrot.lane.b32.xlu0 %v877, 17
        %v928 = vpop.permute.xlu0 %927
        %v929 = vsel %vm429, %v926, %v928
        %v930 = vsel %vm429, %v924, %v926
        %v931 = vsel %vm429, %v928, %v924
        %s932 = sld [smem:[#allocation4 + $0x9]]
        %v933 = vstv %s932
        %v934 = vmul.f32 %v931, %v933
        %v935 = vmul.f32 %v930, %v933
        %v936 = vmul.f32 %v929, %v933
        %v939 = vrot.slane %v935, 4
        %v940 = vsel %vm396, %v934, %v939
        %v942 = vadd.f32 %v921, %v940
        %v943 = vadd.f32 %v922, %v936
        %944 = vrot.lane.b32.xlu0 %v875, 1
        %v945 = vpop.permute.xlu0 %944
        %946 = vrot.lane.b32.xlu0 %v876, 1
        %v947 = vpop.permute.xlu0 %946
        %948 = vrot.lane.b32.xlu0 %v877, 1
        %v949 = vpop.permute.xlu0 %948
        %v950 = vsel %vm451, %v947, %v949
        %v951 = vsel %vm451, %v945, %v947
        %v952 = vsel %vm451, %v949, %v945
        %s953 = sld [smem:[#allocation4 + $0xd]]
        %v954 = vstv %s953
        %v955 = vmul.f32 %v952, %v954
        %v956 = vmul.f32 %v951, %v954
        %v957 = vmul.f32 %v950, %v954
        %v960 = vrot.slane %v956, 4
        %v961 = vsel %vm396, %v955, %v960
        %v963 = vadd.f32 %v942, %v961
        %v964 = vadd.f32 %v943, %v957
        %965 = vrot.lane.b32.xlu0 %v875, 127
        %v966 = vpop.permute.xlu0 %965
        %967 = vrot.lane.b32.xlu0 %v876, 127
        %v968 = vpop.permute.xlu0 %967
        %969 = vrot.lane.b32.xlu0 %v877, 127
        %v970 = vpop.permute.xlu0 %969
        %v971 = vsel %vm473, %v968, %v970
        %v972 = vsel %vm473, %v966, %v968
        %v973 = vsel %vm473, %v970, %v966
        %s974 = sld [smem:[#allocation4 + $0x15]]
        %v975 = vstv %s974
        %v976 = vmul.f32 %v972, %v975
        %v977 = vmul.f32 %v971, %v975
        %v978 = vmul.f32 %v973, %v975
        %v981 = vrot.slane %v977, 4
        %v982 = vsel %vm396, %v976, %v981
        %v984 = vadd.f32 %v963, %v982
        %v985 = vadd.f32 %v964, %v978
        %986 = vrot.lane.b32.xlu0 %v875, 111
        %v987 = vpop.permute.xlu0 %986
        %988 = vrot.lane.b32.xlu0 %v876, 111
        %v989 = vpop.permute.xlu0 %988
        %990 = vrot.lane.b32.xlu0 %v877, 111
        %v991 = vpop.permute.xlu0 %990
        %v992 = vsel %vm495, %v989, %v991
        %v993 = vsel %vm495, %v987, %v989
        %v994 = vsel %vm495, %v991, %v987
        %s995 = sld [smem:[#allocation4 + $0x19]]
        %v996 = vstv %s995
        %v997 = vmul.f32 %v993, %v996
        %v998 = vmul.f32 %v992, %v996
        %v999 = vmul.f32 %v994, %v996
        %v1002 = vrot.slane %v998, 4
        %v1003 = vsel %vm396, %v997, %v1002
        %v1005 = vadd.f32 %v984, %v1003
        %v1006 = vadd.f32 %v985, %v999
        %1007 = vrot.lane.b32.xlu0 %v875, 110
        %v1008 = vpop.permute.xlu0 %1007
        %1009 = vrot.lane.b32.xlu0 %v876, 110
        %v1010 = vpop.permute.xlu0 %1009
        %1011 = vrot.lane.b32.xlu0 %v877, 110
        %v1012 = vpop.permute.xlu0 %1011
        %v1013 = vsel %vm517, %v1010, %v1012
        %v1014 = vsel %vm517, %v1008, %v1010
        %v1015 = vsel %vm517, %v1012, %v1008
        %s1016 = sld [smem:[#allocation4 + $0x1d]]
        %v1017 = vstv %s1016
        %v1018 = vmul.f32 %v1014, %v1017
        %v1019 = vmul.f32 %v1013, %v1017
        %v1020 = vmul.f32 %v1015, %v1017
        %v1023 = vrot.slane %v1019, 4
        %v1024 = vsel %vm396, %v1018, %v1023
        %v1026 = vadd.f32 %v1005, %v1024
        %v1027 = vadd.f32 %v1006, %v1020
        %1028 = vrot.lane.b32.xlu0 %v875, 109
        %v1029 = vpop.permute.xlu0 %1028
        %1030 = vrot.lane.b32.xlu0 %v876, 109
        %v1031 = vpop.permute.xlu0 %1030
        %1032 = vrot.lane.b32.xlu0 %v877, 109
        %v1033 = vpop.permute.xlu0 %1032
        %v1034 = vsel %vm539, %v1031, %v1033
        %v1035 = vsel %vm539, %v1029, %v1031
        %v1036 = vsel %vm539, %v1033, %v1029
        %s1037 = sld [smem:[#allocation4 + $0x21]]
        %v1038 = vstv %s1037
        %v1039 = vmul.f32 %v1035, %v1038
        %v1040 = vmul.f32 %v1034, %v1038
        %v1041 = vmul.f32 %v1036, %v1038
        %v1044 = vrot.slane %v1040, 4
        %v1045 = vsel %vm396, %v1039, %v1044
        %v1047 = vadd.f32 %v1026, %v1045
        %v1048 = vadd.f32 %v1027, %v1041
        %s1049 = sld [smem:[#allocation6 + $0x1]]
        %v1050 = vstv %s1049
        %v1051 = vmul.f32 %v316, %v1050
        %v1052 = vmul.f32 %v317, %v1050
        %s1053 = sld [smem:[#allocation6 + $0x5]]
        %v1054 = vstv %s1053
        %v1055 = vmul.f32 %v316, %v1054
        %v1056 = vmul.f32 %v317, %v1054
        %v1059 = vrot.slane %v1055, 5
        %v1060 = vrot.slane %v1059, 4
        %v1061 = vrot.slane %v1056, 5
        %v1062 = vrot.slane %v1061, 4
        %v1065 = vadd.f32 %v1051, %v1060
        %v1066 = vadd.f32 %v1052, %v1062
        %s1067 = sld [smem:[#allocation6 + $0x9]]
        %v1068 = vstv %s1067
        %v1069 = vmul.f32 %v316, %v1068
        %v1070 = vmul.f32 %v317, %v1068
        %v1073 = vrot.slane %v1069, 6
        %v1074 = vrot.slane %v1073, 4
        %v1075 = vrot.slane %v1070, 6
        %v1076 = vrot.slane %v1075, 4
        %v1079 = vadd.f32 %v1065, %v1074
        %v1080 = vadd.f32 %v1066, %v1076
        %s1081 = sld [smem:[#allocation6 + $0xd]]
        %v1082 = vstv %s1081
        %v1083 = vmul.f32 %v316, %v1082
        %v1084 = vmul.f32 %v317, %v1082
        %v1087 = vrot.slane %v1083, 7
        %v1088 = vrot.slane %v1087, 4
        %v1089 = vrot.slane %v1084, 7
        %v1090 = vrot.slane %v1089, 4
        %v1093 = vadd.f32 %v1079, %v1088
        %v1094 = vadd.f32 %v1080, %v1090
        %s1095 = sld [smem:[#allocation7 + $0x11]]
        %v1096 = vstv %s1095
        %v1097 = vmul.f32 %v1093, %v1096
        %v1098 = vmul.f32 %v1094, %v1096
        %v1101 = vperm.slane %v1093, 0
        %v1102 = vperm.slane %v1093, 4
        %v1103 = vperm.slane %v1094, 0
        %1107 = vrot.lane.b32.xlu0 %v1101, 19
        %v1108 = vpop.permute.xlu0 %1107
        %1109 = vrot.lane.b32.xlu0 %v1102, 19
        %v1110 = vpop.permute.xlu0 %1109
        %1111 = vrot.lane.b32.xlu0 %v1103, 19
        %v1112 = vpop.permute.xlu0 %1111
        %v1113 = vsel %vm384, %v1110, %v1112
        %v1114 = vsel %vm384, %v1108, %v1110
        %v1115 = vsel %vm384, %v1112, %v1108
        %s1116 = sld [smem:[#allocation7 + $0x1]]
        %v1117 = vstv %s1116
        %v1118 = vmul.f32 %v1115, %v1117
        %v1119 = vmul.f32 %v1114, %v1117
        %v1120 = vmul.f32 %v1113, %v1117
        %v1123 = vrot.slane %v1119, 4
        %v1124 = vsel %vm396, %v1118, %v1123
        %v1126 = vadd.f32 %v1097, %v1124
        %v1127 = vadd.f32 %v1098, %v1120
        %1128 = vrot.lane.b32.xlu0 %v1101, 18
        %v1129 = vpop.permute.xlu0 %1128
        %1130 = vrot.lane.b32.xlu0 %v1102, 18
        %v1131 = vpop.permute.xlu0 %1130
        %1132 = vrot.lane.b32.xlu0 %v1103, 18
        %v1133 = vpop.permute.xlu0 %1132
        %v1134 = vsel %vm407, %v1131, %v1133
        %v1135 = vsel %vm407, %v1129, %v1131
        %v1136 = vsel %vm407, %v1133, %v1129
        %s1137 = sld [smem:[#allocation7 + $0x5]]
        %v1138 = vstv %s1137
        %v1139 = vmul.f32 %v1136, %v1138
        %v1140 = vmul.f32 %v1135, %v1138
        %v1141 = vmul.f32 %v1134, %v1138
        %v1144 = vrot.slane %v1140, 4
        %v1145 = vsel %vm396, %v1139, %v1144
        %v1147 = vadd.f32 %v1126, %v1145
        %v1148 = vadd.f32 %v1127, %v1141
        %1149 = vrot.lane.b32.xlu0 %v1101, 17
        %v1150 = vpop.permute.xlu0 %1149
        %1151 = vrot.lane.b32.xlu0 %v1102, 17
        %v1152 = vpop.permute.xlu0 %1151
        %1153 = vrot.lane.b32.xlu0 %v1103, 17
        %v1154 = vpop.permute.xlu0 %1153
        %v1155 = vsel %vm429, %v1152, %v1154
        %v1156 = vsel %vm429, %v1150, %v1152
        %v1157 = vsel %vm429, %v1154, %v1150
        %s1158 = sld [smem:[#allocation7 + $0x9]]
        %v1159 = vstv %s1158
        %v1160 = vmul.f32 %v1157, %v1159
        %v1161 = vmul.f32 %v1156, %v1159
        %v1162 = vmul.f32 %v1155, %v1159
        %v1165 = vrot.slane %v1161, 4
        %v1166 = vsel %vm396, %v1160, %v1165
        %v1168 = vadd.f32 %v1147, %v1166
        %v1169 = vadd.f32 %v1148, %v1162
        %1170 = vrot.lane.b32.xlu0 %v1101, 1
        %v1171 = vpop.permute.xlu0 %1170
        %1172 = vrot.lane.b32.xlu0 %v1102, 1
        %v1173 = vpop.permute.xlu0 %1172
        %1174 = vrot.lane.b32.xlu0 %v1103, 1
        %v1175 = vpop.permute.xlu0 %1174
        %v1176 = vsel %vm451, %v1173, %v1175
        %v1177 = vsel %vm451, %v1171, %v1173
        %v1178 = vsel %vm451, %v1175, %v1171
        %s1179 = sld [smem:[#allocation7 + $0xd]]
        %v1180 = vstv %s1179
        %v1181 = vmul.f32 %v1178, %v1180
        %v1182 = vmul.f32 %v1177, %v1180
        %v1183 = vmul.f32 %v1176, %v1180
        %v1186 = vrot.slane %v1182, 4
        %v1187 = vsel %vm396, %v1181, %v1186
        %v1189 = vadd.f32 %v1168, %v1187
        %v1190 = vadd.f32 %v1169, %v1183
        %1191 = vrot.lane.b32.xlu0 %v1101, 127
        %v1192 = vpop.permute.xlu0 %1191
        %1193 = vrot.lane.b32.xlu0 %v1102, 127
        %v1194 = vpop.permute.xlu0 %1193
        %1195 = vrot.lane.b32.xlu0 %v1103, 127
        %v1196 = vpop.permute.xlu0 %1195
        %v1197 = vsel %vm473, %v1194, %v1196
        %v1198 = vsel %vm473, %v1192, %v1194
        %v1199 = vsel %vm473, %v1196, %v1192
        %s1200 = sld [smem:[#allocation7 + $0x15]]
        %v1201 = vstv %s1200
        %v1202 = vmul.f32 %v1198, %v1201
        %v1203 = vmul.f32 %v1197, %v1201
        %v1204 = vmul.f32 %v1199, %v1201
        %v1207 = vrot.slane %v1203, 4
        %v1208 = vsel %vm396, %v1202, %v1207
        %v1210 = vadd.f32 %v1189, %v1208
        %v1211 = vadd.f32 %v1190, %v1204
        %1212 = vrot.lane.b32.xlu0 %v1101, 111
        %v1213 = vpop.permute.xlu0 %1212
        %1214 = vrot.lane.b32.xlu0 %v1102, 111
        %v1215 = vpop.permute.xlu0 %1214
        %1216 = vrot.lane.b32.xlu0 %v1103, 111
        %v1217 = vpop.permute.xlu0 %1216
        %v1218 = vsel %vm495, %v1215, %v1217
        %v1219 = vsel %vm495, %v1213, %v1215
        %v1220 = vsel %vm495, %v1217, %v1213
        %s1221 = sld [smem:[#allocation7 + $0x19]]
        %v1222 = vstv %s1221
        %v1223 = vmul.f32 %v1219, %v1222
        %v1224 = vmul.f32 %v1218, %v1222
        %v1225 = vmul.f32 %v1220, %v1222
        %v1228 = vrot.slane %v1224, 4
        %v1229 = vsel %vm396, %v1223, %v1228
        %v1231 = vadd.f32 %v1210, %v1229
        %v1232 = vadd.f32 %v1211, %v1225
        %1233 = vrot.lane.b32.xlu0 %v1101, 110
        %v1234 = vpop.permute.xlu0 %1233
        %1235 = vrot.lane.b32.xlu0 %v1102, 110
        %v1236 = vpop.permute.xlu0 %1235
        %1237 = vrot.lane.b32.xlu0 %v1103, 110
        %v1238 = vpop.permute.xlu0 %1237
        %v1239 = vsel %vm517, %v1236, %v1238
        %v1240 = vsel %vm517, %v1234, %v1236
        %v1241 = vsel %vm517, %v1238, %v1234
        %s1242 = sld [smem:[#allocation7 + $0x1d]]
        %v1243 = vstv %s1242
        %v1244 = vmul.f32 %v1240, %v1243
        %v1245 = vmul.f32 %v1239, %v1243
        %v1246 = vmul.f32 %v1241, %v1243
        %v1249 = vrot.slane %v1245, 4
        %v1250 = vsel %vm396, %v1244, %v1249
        %v1252 = vadd.f32 %v1231, %v1250
        %v1253 = vadd.f32 %v1232, %v1246
        %1254 = vrot.lane.b32.xlu0 %v1101, 109
        %v1255 = vpop.permute.xlu0 %1254
        %1256 = vrot.lane.b32.xlu0 %v1102, 109
        %v1257 = vpop.permute.xlu0 %1256
        %1258 = vrot.lane.b32.xlu0 %v1103, 109
        %v1259 = vpop.permute.xlu0 %1258
        %v1260 = vsel %vm539, %v1257, %v1259
        %v1261 = vsel %vm539, %v1255, %v1257
        %v1262 = vsel %vm539, %v1259, %v1255
        %s1263 = sld [smem:[#allocation7 + $0x21]]
        %v1264 = vstv %s1263
        %v1265 = vmul.f32 %v1261, %v1264
        %v1266 = vmul.f32 %v1260, %v1264
        %v1267 = vmul.f32 %v1262, %v1264
        %v1270 = vrot.slane %v1266, 4
        %v1271 = vsel %vm396, %v1265, %v1270
        %v1273 = vadd.f32 %v1252, %v1271
        %v1274 = vadd.f32 %v1253, %v1267
        %v1275 = vsub.f32 0.0, %v1273
        %v1276 = vsub.f32 0.0, %v1274
        %v1277 = vmul.f32 %v1275, 1.442695
        %v1278 = vpow.pop %v1277
        %v1279 = vmul.f32 %v1276, 1.442695
        %v1280 = vpow.pop %v1279
        %v1281 = vadd.f32 %v1278, 1.0
        %v1282 = vadd.f32 %v1280, 1.0
        %v1283 = vrcp.pop %v1281
        %v1284 = vmul.f32 %v1281, %v1283
        %v1285 = vsub.f32 1.0, %v1284
        %v1286 = vmul.f32 %v1283, %v1285
        %v1287 = vadd.f32 %v1283, %v1286
        %vm1288 = vweird.f32 %v1281
        %vm1289 = vweird.f32 %v1283
        %vm1290 = vmor %vm1288, %vm1289
        %v1291 = vsel %vm1290, %v1283, %v1287
        %v1292 = vand.u32 2147483647, %v1281
        %vm1293 = vcmp.eq.f32.partialorder %v1292, 8.507059e+37
        %v1294 = vand.u32 %v1281, 2147483648
        %v1295 = vor.u32 1.1754944e-38, %v1294
        %v1296 = vsel %vm1293, %v1295, %v1291
        %v1297 = vmul.f32 1.0, %v1296
        %v1298 = vrcp.pop %v1282
        %v1299 = vmul.f32 %v1282, %v1298
        %v1300 = vsub.f32 1.0, %v1299
        %v1301 = vmul.f32 %v1298, %v1300
        %v1302 = vadd.f32 %v1298, %v1301
        %vm1303 = vweird.f32 %v1282
        %vm1304 = vweird.f32 %v1298
        %vm1305 = vmor %vm1303, %vm1304
        %v1306 = vsel %vm1305, %v1298, %v1302
        %v1307 = vand.u32 2147483647, %v1282
        %vm1308 = vcmp.eq.f32.partialorder %v1307, 8.507059e+37
        %v1309 = vand.u32 %v1282, 2147483648
        %v1310 = vor.u32 1.1754944e-38, %v1309
        %v1311 = vsel %vm1308, %v1310, %v1306
        %v1312 = vmul.f32 1.0, %v1311
        %v1313 = vmul.f32 %v1273, %v1297
        %v1314 = vmul.f32 %v1274, %v1312
        %v1315 = vmul.f32 %v1047, %v1313
        %v1316 = vmul.f32 %v1048, %v1314
        %s1317 = sld [smem:[#allocation2 + $0x2]]
        %v1318 = vstv %s1317
        %v1319 = vmul.f32 %v316, %v1318
        %v1320 = vmul.f32 %v317, %v1318
        %s1321 = sld [smem:[#allocation2 + $0x6]]
        %v1322 = vstv %s1321
        %v1323 = vmul.f32 %v316, %v1322
        %v1324 = vmul.f32 %v317, %v1322
        %v1327 = vrot.slane %v1323, 5
        %v1328 = vrot.slane %v1327, 4
        %v1329 = vrot.slane %v1324, 5
        %v1330 = vrot.slane %v1329, 4
        %v1333 = vadd.f32 %v1319, %v1328
        %v1334 = vadd.f32 %v1320, %v1330
        %s1335 = sld [smem:[#allocation2 + $0xa]]
        %v1336 = vstv %s1335
        %v1337 = vmul.f32 %v316, %v1336
        %v1338 = vmul.f32 %v317, %v1336
        %v1341 = vrot.slane %v1337, 6
        %v1342 = vrot.slane %v1341, 4
        %v1343 = vrot.slane %v1338, 6
        %v1344 = vrot.slane %v1343, 4
        %v1347 = vadd.f32 %v1333, %v1342
        %v1348 = vadd.f32 %v1334, %v1344
        %s1349 = sld [smem:[#allocation2 + $0xe]]
        %v1350 = vstv %s1349
        %v1351 = vmul.f32 %v316, %v1350
        %v1352 = vmul.f32 %v317, %v1350
        %v1355 = vrot.slane %v1351, 7
        %v1356 = vrot.slane %v1355, 4
        %v1357 = vrot.slane %v1352, 7
        %v1358 = vrot.slane %v1357, 4
        %v1361 = vadd.f32 %v1347, %v1356
        %v1362 = vadd.f32 %v1348, %v1358
        %s1363 = sld [smem:[#allocation4 + $0x12]]
        %v1364 = vstv %s1363
        %v1365 = vmul.f32 %v1361, %v1364
        %v1366 = vmul.f32 %v1362, %v1364
        %v1369 = vperm.slane %v1361, 0
        %v1370 = vperm.slane %v1361, 4
        %v1371 = vperm.slane %v1362, 0
        %1375 = vrot.lane.b32.xlu0 %v1369, 19
        %v1376 = vpop.permute.xlu0 %1375
        %1377 = vrot.lane.b32.xlu0 %v1370, 19
        %v1378 = vpop.permute.xlu0 %1377
        %1379 = vrot.lane.b32.xlu0 %v1371, 19
        %v1380 = vpop.permute.xlu0 %1379
        %v1381 = vsel %vm384, %v1378, %v1380
        %v1382 = vsel %vm384, %v1376, %v1378
        %v1383 = vsel %vm384, %v1380, %v1376
        %s1384 = sld [smem:[#allocation4 + $0x2]]
        %v1385 = vstv %s1384
        %v1386 = vmul.f32 %v1383, %v1385
        %v1387 = vmul.f32 %v1382, %v1385
        %v1388 = vmul.f32 %v1381, %v1385
        %v1391 = vrot.slane %v1387, 4
        %v1392 = vsel %vm396, %v1386, %v1391
        %v1394 = vadd.f32 %v1365, %v1392
        %v1395 = vadd.f32 %v1366, %v1388
        %1396 = vrot.lane.b32.xlu0 %v1369, 18
        %v1397 = vpop.permute.xlu0 %1396
        %1398 = vrot.lane.b32.xlu0 %v1370, 18
        %v1399 = vpop.permute.xlu0 %1398
        %1400 = vrot.lane.b32.xlu0 %v1371, 18
        %v1401 = vpop.permute.xlu0 %1400
        %v1402 = vsel %vm407, %v1399, %v1401
        %v1403 = vsel %vm407, %v1397, %v1399
        %v1404 = vsel %vm407, %v1401, %v1397
        %s1405 = sld [smem:[#allocation4 + $0x6]]
        %v1406 = vstv %s1405
        %v1407 = vmul.f32 %v1404, %v1406
        %v1408 = vmul.f32 %v1403, %v1406
        %v1409 = vmul.f32 %v1402, %v1406
        %v1412 = vrot.slane %v1408, 4
        %v1413 = vsel %vm396, %v1407, %v1412
        %v1415 = vadd.f32 %v1394, %v1413
        %v1416 = vadd.f32 %v1395, %v1409
        %1417 = vrot.lane.b32.xlu0 %v1369, 17
        %v1418 = vpop.permute.xlu0 %1417
        %1419 = vrot.lane.b32.xlu0 %v1370, 17
        %v1420 = vpop.permute.xlu0 %1419
        %1421 = vrot.lane.b32.xlu0 %v1371, 17
        %v1422 = vpop.permute.xlu0 %1421
        %v1423 = vsel %vm429, %v1420, %v1422
        %v1424 = vsel %vm429, %v1418, %v1420
        %v1425 = vsel %vm429, %v1422, %v1418
        %s1426 = sld [smem:[#allocation4 + $0xa]]
        %v1427 = vstv %s1426
        %v1428 = vmul.f32 %v1425, %v1427
        %v1429 = vmul.f32 %v1424, %v1427
        %v1430 = vmul.f32 %v1423, %v1427
        %v1433 = vrot.slane %v1429, 4
        %v1434 = vsel %vm396, %v1428, %v1433
        %v1436 = vadd.f32 %v1415, %v1434
        %v1437 = vadd.f32 %v1416, %v1430
        %1438 = vrot.lane.b32.xlu0 %v1369, 1
        %v1439 = vpop.permute.xlu0 %1438
        %1440 = vrot.lane.b32.xlu0 %v1370, 1
        %v1441 = vpop.permute.xlu0 %1440
        %1442 = vrot.lane.b32.xlu0 %v1371, 1
        %v1443 = vpop.permute.xlu0 %1442
        %v1444 = vsel %vm451, %v1441, %v1443
        %v1445 = vsel %vm451, %v1439, %v1441
        %v1446 = vsel %vm451, %v1443, %v1439
        %s1447 = sld [smem:[#allocation4 + $0xe]]
        %v1448 = vstv %s1447
        %v1449 = vmul.f32 %v1446, %v1448
        %v1450 = vmul.f32 %v1445, %v1448
        %v1451 = vmul.f32 %v1444, %v1448
        %v1454 = vrot.slane %v1450, 4
        %v1455 = vsel %vm396, %v1449, %v1454
        %v1457 = vadd.f32 %v1436, %v1455
        %v1458 = vadd.f32 %v1437, %v1451
        %1459 = vrot.lane.b32.xlu0 %v1369, 127
        %v1460 = vpop.permute.xlu0 %1459
        %1461 = vrot.lane.b32.xlu0 %v1370, 127
        %v1462 = vpop.permute.xlu0 %1461
        %1463 = vrot.lane.b32.xlu0 %v1371, 127
        %v1464 = vpop.permute.xlu0 %1463
        %v1465 = vsel %vm473, %v1462, %v1464
        %v1466 = vsel %vm473, %v1460, %v1462
        %v1467 = vsel %vm473, %v1464, %v1460
        %s1468 = sld [smem:[#allocation4 + $0x16]]
        %v1469 = vstv %s1468
        %v1470 = vmul.f32 %v1466, %v1469
        %v1471 = vmul.f32 %v1465, %v1469
        %v1472 = vmul.f32 %v1467, %v1469
        %v1475 = vrot.slane %v1471, 4
        %v1476 = vsel %vm396, %v1470, %v1475
        %v1478 = vadd.f32 %v1457, %v1476
        %v1479 = vadd.f32 %v1458, %v1472
        %1480 = vrot.lane.b32.xlu0 %v1369, 111
        %v1481 = vpop.permute.xlu0 %1480
        %1482 = vrot.lane.b32.xlu0 %v1370, 111
        %v1483 = vpop.permute.xlu0 %1482
        %1484 = vrot.lane.b32.xlu0 %v1371, 111
        %v1485 = vpop.permute.xlu0 %1484
        %v1486 = vsel %vm495, %v1483, %v1485
        %v1487 = vsel %vm495, %v1481, %v1483
        %v1488 = vsel %vm495, %v1485, %v1481
        %s1489 = sld [smem:[#allocation4 + $0x1a]]
        %v1490 = vstv %s1489
        %v1491 = vmul.f32 %v1487, %v1490
        %v1492 = vmul.f32 %v1486, %v1490
        %v1493 = vmul.f32 %v1488, %v1490
        %v1496 = vrot.slane %v1492, 4
        %v1497 = vsel %vm396, %v1491, %v1496
        %v1499 = vadd.f32 %v1478, %v1497
        %v1500 = vadd.f32 %v1479, %v1493
        %1501 = vrot.lane.b32.xlu0 %v1369, 110
        %v1502 = vpop.permute.xlu0 %1501
        %1503 = vrot.lane.b32.xlu0 %v1370, 110
        %v1504 = vpop.permute.xlu0 %1503
        %1505 = vrot.lane.b32.xlu0 %v1371, 110
        %v1506 = vpop.permute.xlu0 %1505
        %v1507 = vsel %vm517, %v1504, %v1506
        %v1508 = vsel %vm517, %v1502, %v1504
        %v1509 = vsel %vm517, %v1506, %v1502
        %s1510 = sld [smem:[#allocation4 + $0x1e]]
        %v1511 = vstv %s1510
        %v1512 = vmul.f32 %v1508, %v1511
        %v1513 = vmul.f32 %v1507, %v1511
        %v1514 = vmul.f32 %v1509, %v1511
        %v1517 = vrot.slane %v1513, 4
        %v1518 = vsel %vm396, %v1512, %v1517
        %v1520 = vadd.f32 %v1499, %v1518
        %v1521 = vadd.f32 %v1500, %v1514
        %1522 = vrot.lane.b32.xlu0 %v1369, 109
        %v1523 = vpop.permute.xlu0 %1522
        %1524 = vrot.lane.b32.xlu0 %v1370, 109
        %v1525 = vpop.permute.xlu0 %1524
        %1526 = vrot.lane.b32.xlu0 %v1371, 109
        %v1527 = vpop.permute.xlu0 %1526
        %v1528 = vsel %vm539, %v1525, %v1527
        %v1529 = vsel %vm539, %v1523, %v1525
        %v1530 = vsel %vm539, %v1527, %v1523
        %s1531 = sld [smem:[#allocation4 + $0x22]]
        %v1532 = vstv %s1531
        %v1533 = vmul.f32 %v1529, %v1532
        %v1534 = vmul.f32 %v1528, %v1532
        %v1535 = vmul.f32 %v1530, %v1532
        %v1538 = vrot.slane %v1534, 4
        %v1539 = vsel %vm396, %v1533, %v1538
        %v1541 = vadd.f32 %v1520, %v1539
        %v1542 = vadd.f32 %v1521, %v1535
        %s1543 = sld [smem:[#allocation6 + $0x2]]
        %v1544 = vstv %s1543
        %v1545 = vmul.f32 %v316, %v1544
        %v1546 = vmul.f32 %v317, %v1544
        %s1547 = sld [smem:[#allocation6 + $0x6]]
        %v1548 = vstv %s1547
        %v1549 = vmul.f32 %v316, %v1548
        %v1550 = vmul.f32 %v317, %v1548
        %v1553 = vrot.slane %v1549, 5
        %v1554 = vrot.slane %v1553, 4
        %v1555 = vrot.slane %v1550, 5
        %v1556 = vrot.slane %v1555, 4
        %v1559 = vadd.f32 %v1545, %v1554
        %v1560 = vadd.f32 %v1546, %v1556
        %s1561 = sld [smem:[#allocation6 + $0xa]]
        %v1562 = vstv %s1561
        %v1563 = vmul.f32 %v316, %v1562
        %v1564 = vmul.f32 %v317, %v1562
        %v1567 = vrot.slane %v1563, 6
        %v1568 = vrot.slane %v1567, 4
        %v1569 = vrot.slane %v1564, 6
        %v1570 = vrot.slane %v1569, 4
        %v1573 = vadd.f32 %v1559, %v1568
        %v1574 = vadd.f32 %v1560, %v1570
        %s1575 = sld [smem:[#allocation6 + $0xe]]
        %v1576 = vstv %s1575
        %v1577 = vmul.f32 %v316, %v1576
        %v1578 = vmul.f32 %v317, %v1576
        %v1581 = vrot.slane %v1577, 7
        %v1582 = vrot.slane %v1581, 4
        %v1583 = vrot.slane %v1578, 7
        %v1584 = vrot.slane %v1583, 4
        %v1587 = vadd.f32 %v1573, %v1582
        %v1588 = vadd.f32 %v1574, %v1584
        %s1589 = sld [smem:[#allocation7 + $0x12]]
        %v1590 = vstv %s1589
        %v1591 = vmul.f32 %v1587, %v1590
        %v1592 = vmul.f32 %v1588, %v1590
        %v1595 = vperm.slane %v1587, 0
        %v1596 = vperm.slane %v1587, 4
        %v1597 = vperm.slane %v1588, 0
        %1601 = vrot.lane.b32.xlu0 %v1595, 19
        %v1602 = vpop.permute.xlu0 %1601
        %1603 = vrot.lane.b32.xlu0 %v1596, 19
        %v1604 = vpop.permute.xlu0 %1603
        %1605 = vrot.lane.b32.xlu0 %v1597, 19
        %v1606 = vpop.permute.xlu0 %1605
        %v1607 = vsel %vm384, %v1604, %v1606
        %v1608 = vsel %vm384, %v1602, %v1604
        %v1609 = vsel %vm384, %v1606, %v1602
        %s1610 = sld [smem:[#allocation7 + $0x2]]
        %v1611 = vstv %s1610
        %v1612 = vmul.f32 %v1609, %v1611
        %v1613 = vmul.f32 %v1608, %v1611
        %v1614 = vmul.f32 %v1607, %v1611
        %v1617 = vrot.slane %v1613, 4
        %v1618 = vsel %vm396, %v1612, %v1617
        %v1620 = vadd.f32 %v1591, %v1618
        %v1621 = vadd.f32 %v1592, %v1614
        %1622 = vrot.lane.b32.xlu0 %v1595, 18
        %v1623 = vpop.permute.xlu0 %1622
        %1624 = vrot.lane.b32.xlu0 %v1596, 18
        %v1625 = vpop.permute.xlu0 %1624
        %1626 = vrot.lane.b32.xlu0 %v1597, 18
        %v1627 = vpop.permute.xlu0 %1626
        %v1628 = vsel %vm407, %v1625, %v1627
        %v1629 = vsel %vm407, %v1623, %v1625
        %v1630 = vsel %vm407, %v1627, %v1623
        %s1631 = sld [smem:[#allocation7 + $0x6]]
        %v1632 = vstv %s1631
        %v1633 = vmul.f32 %v1630, %v1632
        %v1634 = vmul.f32 %v1629, %v1632
        %v1635 = vmul.f32 %v1628, %v1632
        %v1638 = vrot.slane %v1634, 4
        %v1639 = vsel %vm396, %v1633, %v1638
        %v1641 = vadd.f32 %v1620, %v1639
        %v1642 = vadd.f32 %v1621, %v1635
        %1643 = vrot.lane.b32.xlu0 %v1595, 17
        %v1644 = vpop.permute.xlu0 %1643
        %1645 = vrot.lane.b32.xlu0 %v1596, 17
        %v1646 = vpop.permute.xlu0 %1645
        %1647 = vrot.lane.b32.xlu0 %v1597, 17
        %v1648 = vpop.permute.xlu0 %1647
        %v1649 = vsel %vm429, %v1646, %v1648
        %v1650 = vsel %vm429, %v1644, %v1646
        %v1651 = vsel %vm429, %v1648, %v1644
        %s1652 = sld [smem:[#allocation7 + $0xa]]
        %v1653 = vstv %s1652
        %v1654 = vmul.f32 %v1651, %v1653
        %v1655 = vmul.f32 %v1650, %v1653
        %v1656 = vmul.f32 %v1649, %v1653
        %v1659 = vrot.slane %v1655, 4
        %v1660 = vsel %vm396, %v1654, %v1659
        %v1662 = vadd.f32 %v1641, %v1660
        %v1663 = vadd.f32 %v1642, %v1656
        %1664 = vrot.lane.b32.xlu0 %v1595, 1
        %v1665 = vpop.permute.xlu0 %1664
        %1666 = vrot.lane.b32.xlu0 %v1596, 1
        %v1667 = vpop.permute.xlu0 %1666
        %1668 = vrot.lane.b32.xlu0 %v1597, 1
        %v1669 = vpop.permute.xlu0 %1668
        %v1670 = vsel %vm451, %v1667, %v1669
        %v1671 = vsel %vm451, %v1665, %v1667
        %v1672 = vsel %vm451, %v1669, %v1665
        %s1673 = sld [smem:[#allocation7 + $0xe]]
        %v1674 = vstv %s1673
        %v1675 = vmul.f32 %v1672, %v1674
        %v1676 = vmul.f32 %v1671, %v1674
        %v1677 = vmul.f32 %v1670, %v1674
        %v1680 = vrot.slane %v1676, 4
        %v1681 = vsel %vm396, %v1675, %v1680
        %v1683 = vadd.f32 %v1662, %v1681
        %v1684 = vadd.f32 %v1663, %v1677
        %1685 = vrot.lane.b32.xlu0 %v1595, 127
        %v1686 = vpop.permute.xlu0 %1685
        %1687 = vrot.lane.b32.xlu0 %v1596, 127
        %v1688 = vpop.permute.xlu0 %1687
        %1689 = vrot.lane.b32.xlu0 %v1597, 127
        %v1690 = vpop.permute.xlu0 %1689
        %v1691 = vsel %vm473, %v1688, %v1690
        %v1692 = vsel %vm473, %v1686, %v1688
        %v1693 = vsel %vm473, %v1690, %v1686
        %s1694 = sld [smem:[#allocation7 + $0x16]]
        %v1695 = vstv %s1694
        %v1696 = vmul.f32 %v1692, %v1695
        %v1697 = vmul.f32 %v1691, %v1695
        %v1698 = vmul.f32 %v1693, %v1695
        %v1701 = vrot.slane %v1697, 4
        %v1702 = vsel %vm396, %v1696, %v1701
        %v1704 = vadd.f32 %v1683, %v1702
        %v1705 = vadd.f32 %v1684, %v1698
        %1706 = vrot.lane.b32.xlu0 %v1595, 111
        %v1707 = vpop.permute.xlu0 %1706
        %1708 = vrot.lane.b32.xlu0 %v1596, 111
        %v1709 = vpop.permute.xlu0 %1708
        %1710 = vrot.lane.b32.xlu0 %v1597, 111
        %v1711 = vpop.permute.xlu0 %1710
        %v1712 = vsel %vm495, %v1709, %v1711
        %v1713 = vsel %vm495, %v1707, %v1709
        %v1714 = vsel %vm495, %v1711, %v1707
        %s1715 = sld [smem:[#allocation7 + $0x1a]]
        %v1716 = vstv %s1715
        %v1717 = vmul.f32 %v1713, %v1716
        %v1718 = vmul.f32 %v1712, %v1716
        %v1719 = vmul.f32 %v1714, %v1716
        %v1722 = vrot.slane %v1718, 4
        %v1723 = vsel %vm396, %v1717, %v1722
        %v1725 = vadd.f32 %v1704, %v1723
        %v1726 = vadd.f32 %v1705, %v1719
        %1727 = vrot.lane.b32.xlu0 %v1595, 110
        %v1728 = vpop.permute.xlu0 %1727
        %1729 = vrot.lane.b32.xlu0 %v1596, 110
        %v1730 = vpop.permute.xlu0 %1729
        %1731 = vrot.lane.b32.xlu0 %v1597, 110
        %v1732 = vpop.permute.xlu0 %1731
        %v1733 = vsel %vm517, %v1730, %v1732
        %v1734 = vsel %vm517, %v1728, %v1730
        %v1735 = vsel %vm517, %v1732, %v1728
        %s1736 = sld [smem:[#allocation7 + $0x1e]]
        %v1737 = vstv %s1736
        %v1738 = vmul.f32 %v1734, %v1737
        %v1739 = vmul.f32 %v1733, %v1737
        %v1740 = vmul.f32 %v1735, %v1737
        %v1743 = vrot.slane %v1739, 4
        %v1744 = vsel %vm396, %v1738, %v1743
        %v1746 = vadd.f32 %v1725, %v1744
        %v1747 = vadd.f32 %v1726, %v1740
        %1748 = vrot.lane.b32.xlu0 %v1595, 109
        %v1749 = vpop.permute.xlu0 %1748
        %1750 = vrot.lane.b32.xlu0 %v1596, 109
        %v1751 = vpop.permute.xlu0 %1750
        %1752 = vrot.lane.b32.xlu0 %v1597, 109
        %v1753 = vpop.permute.xlu0 %1752
        %v1754 = vsel %vm539, %v1751, %v1753
        %v1755 = vsel %vm539, %v1749, %v1751
        %v1756 = vsel %vm539, %v1753, %v1749
        %s1757 = sld [smem:[#allocation7 + $0x22]]
        %v1758 = vstv %s1757
        %v1759 = vmul.f32 %v1755, %v1758
        %v1760 = vmul.f32 %v1754, %v1758
        %v1761 = vmul.f32 %v1756, %v1758
        %v1764 = vrot.slane %v1760, 4
        %v1765 = vsel %vm396, %v1759, %v1764
        %v1767 = vadd.f32 %v1746, %v1765
        %v1768 = vadd.f32 %v1747, %v1761
        %v1769 = vsub.f32 0.0, %v1767
        %v1770 = vsub.f32 0.0, %v1768
        %v1771 = vmul.f32 %v1769, 1.442695
        %v1772 = vpow.pop %v1771
        %v1773 = vmul.f32 %v1770, 1.442695
        %v1774 = vpow.pop %v1773
        %v1775 = vadd.f32 %v1772, 1.0
        %v1776 = vadd.f32 %v1774, 1.0
        %v1777 = vrcp.pop %v1775
        %v1778 = vmul.f32 %v1775, %v1777
        %v1779 = vsub.f32 1.0, %v1778
        %v1780 = vmul.f32 %v1777, %v1779
        %v1781 = vadd.f32 %v1777, %v1780
        %vm1782 = vweird.f32 %v1775
        %vm1783 = vweird.f32 %v1777
        %vm1784 = vmor %vm1782, %vm1783
        %v1785 = vsel %vm1784, %v1777, %v1781
        %v1786 = vand.u32 2147483647, %v1775
        %vm1787 = vcmp.eq.f32.partialorder %v1786, 8.507059e+37
        %v1788 = vand.u32 %v1775, 2147483648
        %v1789 = vor.u32 1.1754944e-38, %v1788
        %v1790 = vsel %vm1787, %v1789, %v1785
        %v1791 = vmul.f32 1.0, %v1790
        %v1792 = vrcp.pop %v1776
        %v1793 = vmul.f32 %v1776, %v1792
        %v1794 = vsub.f32 1.0, %v1793
        %v1795 = vmul.f32 %v1792, %v1794
        %v1796 = vadd.f32 %v1792, %v1795
        %vm1797 = vweird.f32 %v1776
        %vm1798 = vweird.f32 %v1792
        %vm1799 = vmor %vm1797, %vm1798
        %v1800 = vsel %vm1799, %v1792, %v1796
        %v1801 = vand.u32 2147483647, %v1776
        %vm1802 = vcmp.eq.f32.partialorder %v1801, 8.507059e+37
        %v1803 = vand.u32 %v1776, 2147483648
        %v1804 = vor.u32 1.1754944e-38, %v1803
        %v1805 = vsel %vm1802, %v1804, %v1800
        %v1806 = vmul.f32 1.0, %v1805
        %v1807 = vmul.f32 %v1767, %v1791
        %v1808 = vmul.f32 %v1768, %v1806
        %v1809 = vmul.f32 %v1541, %v1807
        %v1810 = vmul.f32 %v1542, %v1808
        %s1811 = sld [smem:[#allocation2 + $0x3]]
        %v1812 = vstv %s1811
        %v1813 = vmul.f32 %v316, %v1812
        %v1814 = vmul.f32 %v317, %v1812
        %s1815 = sld [smem:[#allocation2 + $0x7]]
        %v1816 = vstv %s1815
        %v1817 = vmul.f32 %v316, %v1816
        %v1818 = vmul.f32 %v317, %v1816
        %v1821 = vrot.slane %v1817, 5
        %v1822 = vrot.slane %v1821, 4
        %v1823 = vrot.slane %v1818, 5
        %v1824 = vrot.slane %v1823, 4
        %v1827 = vadd.f32 %v1813, %v1822
        %v1828 = vadd.f32 %v1814, %v1824
        %s1829 = sld [smem:[#allocation2 + $0xb]]
        %v1830 = vstv %s1829
        %v1831 = vmul.f32 %v316, %v1830
        %v1832 = vmul.f32 %v317, %v1830
        %v1835 = vrot.slane %v1831, 6
        %v1836 = vrot.slane %v1835, 4
        %v1837 = vrot.slane %v1832, 6
        %v1838 = vrot.slane %v1837, 4
        %v1841 = vadd.f32 %v1827, %v1836
        %v1842 = vadd.f32 %v1828, %v1838
        %s1843 = sld [smem:[#allocation2 + $0xf]]
        %v1844 = vstv %s1843
        %v1845 = vmul.f32 %v316, %v1844
        %v1846 = vmul.f32 %v317, %v1844
        %v1849 = vrot.slane %v1845, 7
        %v1850 = vrot.slane %v1849, 4
        %v1851 = vrot.slane %v1846, 7
        %v1852 = vrot.slane %v1851, 4
        %v1855 = vadd.f32 %v1841, %v1850
        %v1856 = vadd.f32 %v1842, %v1852
        %s1857 = sld [smem:[#allocation4 + $0x13]]
        %v1858 = vstv %s1857
        %v1859 = vmul.f32 %v1855, %v1858
        %v1860 = vmul.f32 %v1856, %v1858
        %v1863 = vperm.slane %v1855, 0
        %v1864 = vperm.slane %v1855, 4
        %v1865 = vperm.slane %v1856, 0
        %1869 = vrot.lane.b32.xlu0 %v1863, 19
        %v1870 = vpop.permute.xlu0 %1869
        %1871 = vrot.lane.b32.xlu0 %v1864, 19
        %v1872 = vpop.permute.xlu0 %1871
        %1873 = vrot.lane.b32.xlu0 %v1865, 19
        %v1874 = vpop.permute.xlu0 %1873
        %v1875 = vsel %vm384, %v1872, %v1874
        %v1876 = vsel %vm384, %v1870, %v1872
        %v1877 = vsel %vm384, %v1874, %v1870
        %s1878 = sld [smem:[#allocation4 + $0x3]]
        %v1879 = vstv %s1878
        %v1880 = vmul.f32 %v1877, %v1879
        %v1881 = vmul.f32 %v1876, %v1879
        %v1882 = vmul.f32 %v1875, %v1879
        %v1885 = vrot.slane %v1881, 4
        %v1886 = vsel %vm396, %v1880, %v1885
        %v1888 = vadd.f32 %v1859, %v1886
        %v1889 = vadd.f32 %v1860, %v1882
        %1890 = vrot.lane.b32.xlu0 %v1863, 18
        %v1891 = vpop.permute.xlu0 %1890
        %1892 = vrot.lane.b32.xlu0 %v1864, 18
        %v1893 = vpop.permute.xlu0 %1892
        %1894 = vrot.lane.b32.xlu0 %v1865, 18
        %v1895 = vpop.permute.xlu0 %1894
        %v1896 = vsel %vm407, %v1893, %v1895
        %v1897 = vsel %vm407, %v1891, %v1893
        %v1898 = vsel %vm407, %v1895, %v1891
        %s1899 = sld [smem:[#allocation4 + $0x7]]
        %v1900 = vstv %s1899
        %v1901 = vmul.f32 %v1898, %v1900
        %v1902 = vmul.f32 %v1897, %v1900
        %v1903 = vmul.f32 %v1896, %v1900
        %v1906 = vrot.slane %v1902, 4
        %v1907 = vsel %vm396, %v1901, %v1906
        %v1909 = vadd.f32 %v1888, %v1907
        %v1910 = vadd.f32 %v1889, %v1903
        %1911 = vrot.lane.b32.xlu0 %v1863, 17
        %v1912 = vpop.permute.xlu0 %1911
        %1913 = vrot.lane.b32.xlu0 %v1864, 17
        %v1914 = vpop.permute.xlu0 %1913
        %1915 = vrot.lane.b32.xlu0 %v1865, 17
        %v1916 = vpop.permute.xlu0 %1915
        %v1917 = vsel %vm429, %v1914, %v1916
        %v1918 = vsel %vm429, %v1912, %v1914
        %v1919 = vsel %vm429, %v1916, %v1912
        %s1920 = sld [smem:[#allocation4 + $0xb]]
        %v1921 = vstv %s1920
        %v1922 = vmul.f32 %v1919, %v1921
        %v1923 = vmul.f32 %v1918, %v1921
        %v1924 = vmul.f32 %v1917, %v1921
        %v1927 = vrot.slane %v1923, 4
        %v1928 = vsel %vm396, %v1922, %v1927
        %v1930 = vadd.f32 %v1909, %v1928
        %v1931 = vadd.f32 %v1910, %v1924
        %1932 = vrot.lane.b32.xlu0 %v1863, 1
        %v1933 = vpop.permute.xlu0 %1932
        %1934 = vrot.lane.b32.xlu0 %v1864, 1
        %v1935 = vpop.permute.xlu0 %1934
        %1936 = vrot.lane.b32.xlu0 %v1865, 1
        %v1937 = vpop.permute.xlu0 %1936
        %v1938 = vsel %vm451, %v1935, %v1937
        %v1939 = vsel %vm451, %v1933, %v1935
        %v1940 = vsel %vm451, %v1937, %v1933
        %s1941 = sld [smem:[#allocation4 + $0xf]]
        %v1942 = vstv %s1941
        %v1943 = vmul.f32 %v1940, %v1942
        %v1944 = vmul.f32 %v1939, %v1942
        %v1945 = vmul.f32 %v1938, %v1942
        %v1948 = vrot.slane %v1944, 4
        %v1949 = vsel %vm396, %v1943, %v1948
        %v1951 = vadd.f32 %v1930, %v1949
        %v1952 = vadd.f32 %v1931, %v1945
        %1953 = vrot.lane.b32.xlu0 %v1863, 127
        %v1954 = vpop.permute.xlu0 %1953
        %1955 = vrot.lane.b32.xlu0 %v1864, 127
        %v1956 = vpop.permute.xlu0 %1955
        %1957 = vrot.lane.b32.xlu0 %v1865, 127
        %v1958 = vpop.permute.xlu0 %1957
        %v1959 = vsel %vm473, %v1956, %v1958
        %v1960 = vsel %vm473, %v1954, %v1956
        %v1961 = vsel %vm473, %v1958, %v1954
        %s1962 = sld [smem:[#allocation4 + $0x17]]
        %v1963 = vstv %s1962
        %v1964 = vmul.f32 %v1960, %v1963
        %v1965 = vmul.f32 %v1959, %v1963
        %v1966 = vmul.f32 %v1961, %v1963
        %v1969 = vrot.slane %v1965, 4
        %v1970 = vsel %vm396, %v1964, %v1969
        %v1972 = vadd.f32 %v1951, %v1970
        %v1973 = vadd.f32 %v1952, %v1966
        %1974 = vrot.lane.b32.xlu0 %v1863, 111
        %v1975 = vpop.permute.xlu0 %1974
        %1976 = vrot.lane.b32.xlu0 %v1864, 111
        %v1977 = vpop.permute.xlu0 %1976
        %1978 = vrot.lane.b32.xlu0 %v1865, 111
        %v1979 = vpop.permute.xlu0 %1978
        %v1980 = vsel %vm495, %v1977, %v1979
        %v1981 = vsel %vm495, %v1975, %v1977
        %v1982 = vsel %vm495, %v1979, %v1975
        %s1983 = sld [smem:[#allocation4 + $0x1b]]
        %v1984 = vstv %s1983
        %v1985 = vmul.f32 %v1981, %v1984
        %v1986 = vmul.f32 %v1980, %v1984
        %v1987 = vmul.f32 %v1982, %v1984
        %v1990 = vrot.slane %v1986, 4
        %v1991 = vsel %vm396, %v1985, %v1990
        %v1993 = vadd.f32 %v1972, %v1991
        %v1994 = vadd.f32 %v1973, %v1987
        %1995 = vrot.lane.b32.xlu0 %v1863, 110
        %v1996 = vpop.permute.xlu0 %1995
        %1997 = vrot.lane.b32.xlu0 %v1864, 110
        %v1998 = vpop.permute.xlu0 %1997
        %1999 = vrot.lane.b32.xlu0 %v1865, 110
        %v2000 = vpop.permute.xlu0 %1999
        %v2001 = vsel %vm517, %v1998, %v2000
        %v2002 = vsel %vm517, %v1996, %v1998
        %v2003 = vsel %vm517, %v2000, %v1996
        %s2004 = sld [smem:[#allocation4 + $0x1f]]
        %v2005 = vstv %s2004
        %v2006 = vmul.f32 %v2002, %v2005
        %v2007 = vmul.f32 %v2001, %v2005
        %v2008 = vmul.f32 %v2003, %v2005
        %v2011 = vrot.slane %v2007, 4
        %v2012 = vsel %vm396, %v2006, %v2011
        %v2014 = vadd.f32 %v1993, %v2012
        %v2015 = vadd.f32 %v1994, %v2008
        %2016 = vrot.lane.b32.xlu0 %v1863, 109
        %v2017 = vpop.permute.xlu0 %2016
        %2018 = vrot.lane.b32.xlu0 %v1864, 109
        %v2019 = vpop.permute.xlu0 %2018
        %2020 = vrot.lane.b32.xlu0 %v1865, 109
        %v2021 = vpop.permute.xlu0 %2020
        %v2022 = vsel %vm539, %v2019, %v2021
        %v2023 = vsel %vm539, %v2017, %v2019
        %v2024 = vsel %vm539, %v2021, %v2017
        %s2025 = sld [smem:[#allocation4 + $0x23]]
        %v2026 = vstv %s2025
        %v2027 = vmul.f32 %v2023, %v2026
        %v2028 = vmul.f32 %v2022, %v2026
        %v2029 = vmul.f32 %v2024, %v2026
        %v2032 = vrot.slane %v2028, 4
        %v2033 = vsel %vm396, %v2027, %v2032
        %v2035 = vadd.f32 %v2014, %v2033
        %v2036 = vadd.f32 %v2015, %v2029
        %s2037 = sld [smem:[#allocation6 + $0x3]]
        %v2038 = vstv %s2037
        %v2039 = vmul.f32 %v316, %v2038
        %v2040 = vmul.f32 %v317, %v2038
        %s2041 = sld [smem:[#allocation6 + $0x7]]
        %v2042 = vstv %s2041
        %v2043 = vmul.f32 %v316, %v2042
        %v2044 = vmul.f32 %v317, %v2042
        %v2047 = vrot.slane %v2043, 5
        %v2048 = vrot.slane %v2047, 4
        %v2049 = vrot.slane %v2044, 5
        %v2050 = vrot.slane %v2049, 4
        %v2053 = vadd.f32 %v2039, %v2048
        %v2054 = vadd.f32 %v2040, %v2050
        %s2055 = sld [smem:[#allocation6 + $0xb]]
        %v2056 = vstv %s2055
        %v2057 = vmul.f32 %v316, %v2056
        %v2058 = vmul.f32 %v317, %v2056
        %v2061 = vrot.slane %v2057, 6
        %v2062 = vrot.slane %v2061, 4
        %v2063 = vrot.slane %v2058, 6
        %v2064 = vrot.slane %v2063, 4
        %v2067 = vadd.f32 %v2053, %v2062
        %v2068 = vadd.f32 %v2054, %v2064
        %s2069 = sld [smem:[#allocation6 + $0xf]]
        %v2070 = vstv %s2069
        %v2071 = vmul.f32 %v316, %v2070
        %v2072 = vmul.f32 %v317, %v2070
        %v2075 = vrot.slane %v2071, 7
        %v2076 = vrot.slane %v2075, 4
        %v2077 = vrot.slane %v2072, 7
        %v2078 = vrot.slane %v2077, 4
        %v2081 = vadd.f32 %v2067, %v2076
        %v2082 = vadd.f32 %v2068, %v2078
        %s2083 = sld [smem:[#allocation7 + $0x13]]
        %v2084 = vstv %s2083
        %v2085 = vmul.f32 %v2081, %v2084
        %v2086 = vmul.f32 %v2082, %v2084
        %v2089 = vperm.slane %v2081, 0
        %v2090 = vperm.slane %v2081, 4
        %v2091 = vperm.slane %v2082, 0
        %2095 = vrot.lane.b32.xlu0 %v2089, 19
        %v2096 = vpop.permute.xlu0 %2095
        %2097 = vrot.lane.b32.xlu0 %v2090, 19
        %v2098 = vpop.permute.xlu0 %2097
        %2099 = vrot.lane.b32.xlu0 %v2091, 19
        %v2100 = vpop.permute.xlu0 %2099
        %v2101 = vsel %vm384, %v2098, %v2100
        %v2102 = vsel %vm384, %v2096, %v2098
        %v2103 = vsel %vm384, %v2100, %v2096
        %s2104 = sld [smem:[#allocation7 + $0x3]]
        %v2105 = vstv %s2104
        %v2106 = vmul.f32 %v2103, %v2105
        %v2107 = vmul.f32 %v2102, %v2105
        %v2108 = vmul.f32 %v2101, %v2105
        %v2111 = vrot.slane %v2107, 4
        %v2112 = vsel %vm396, %v2106, %v2111
        %v2114 = vadd.f32 %v2085, %v2112
        %v2115 = vadd.f32 %v2086, %v2108
        %2116 = vrot.lane.b32.xlu0 %v2089, 18
        %v2117 = vpop.permute.xlu0 %2116
        %2118 = vrot.lane.b32.xlu0 %v2090, 18
        %v2119 = vpop.permute.xlu0 %2118
        %2120 = vrot.lane.b32.xlu0 %v2091, 18
        %v2121 = vpop.permute.xlu0 %2120
        %v2122 = vsel %vm407, %v2119, %v2121
        %v2123 = vsel %vm407, %v2117, %v2119
        %v2124 = vsel %vm407, %v2121, %v2117
        %s2125 = sld [smem:[#allocation7 + $0x7]]
        %v2126 = vstv %s2125
        %v2127 = vmul.f32 %v2124, %v2126
        %v2128 = vmul.f32 %v2123, %v2126
        %v2129 = vmul.f32 %v2122, %v2126
        %v2132 = vrot.slane %v2128, 4
        %v2133 = vsel %vm396, %v2127, %v2132
        %v2135 = vadd.f32 %v2114, %v2133
        %v2136 = vadd.f32 %v2115, %v2129
        %2137 = vrot.lane.b32.xlu0 %v2089, 17
        %v2138 = vpop.permute.xlu0 %2137
        %2139 = vrot.lane.b32.xlu0 %v2090, 17
        %v2140 = vpop.permute.xlu0 %2139
        %2141 = vrot.lane.b32.xlu0 %v2091, 17
        %v2142 = vpop.permute.xlu0 %2141
        %v2143 = vsel %vm429, %v2140, %v2142
        %v2144 = vsel %vm429, %v2138, %v2140
        %v2145 = vsel %vm429, %v2142, %v2138
        %s2146 = sld [smem:[#allocation7 + $0xb]]
        %v2147 = vstv %s2146
        %v2148 = vmul.f32 %v2145, %v2147
        %v2149 = vmul.f32 %v2144, %v2147
        %v2150 = vmul.f32 %v2143, %v2147
        %v2153 = vrot.slane %v2149, 4
        %v2154 = vsel %vm396, %v2148, %v2153
        %v2156 = vadd.f32 %v2135, %v2154
        %v2157 = vadd.f32 %v2136, %v2150
        %2158 = vrot.lane.b32.xlu0 %v2089, 1
        %v2159 = vpop.permute.xlu0 %2158
        %2160 = vrot.lane.b32.xlu0 %v2090, 1
        %v2161 = vpop.permute.xlu0 %2160
        %2162 = vrot.lane.b32.xlu0 %v2091, 1
        %v2163 = vpop.permute.xlu0 %2162
        %v2164 = vsel %vm451, %v2161, %v2163
        %v2165 = vsel %vm451, %v2159, %v2161
        %v2166 = vsel %vm451, %v2163, %v2159
        %s2167 = sld [smem:[#allocation7 + $0xf]]
        %v2168 = vstv %s2167
        %v2169 = vmul.f32 %v2166, %v2168
        %v2170 = vmul.f32 %v2165, %v2168
        %v2171 = vmul.f32 %v2164, %v2168
        %v2174 = vrot.slane %v2170, 4
        %v2175 = vsel %vm396, %v2169, %v2174
        %v2177 = vadd.f32 %v2156, %v2175
        %v2178 = vadd.f32 %v2157, %v2171
        %2179 = vrot.lane.b32.xlu0 %v2089, 127
        %v2180 = vpop.permute.xlu0 %2179
        %2181 = vrot.lane.b32.xlu0 %v2090, 127
        %v2182 = vpop.permute.xlu0 %2181
        %2183 = vrot.lane.b32.xlu0 %v2091, 127
        %v2184 = vpop.permute.xlu0 %2183
        %v2185 = vsel %vm473, %v2182, %v2184
        %v2186 = vsel %vm473, %v2180, %v2182
        %v2187 = vsel %vm473, %v2184, %v2180
        %s2188 = sld [smem:[#allocation7 + $0x17]]
        %v2189 = vstv %s2188
        %v2190 = vmul.f32 %v2186, %v2189
        %v2191 = vmul.f32 %v2185, %v2189
        %v2192 = vmul.f32 %v2187, %v2189
        %v2195 = vrot.slane %v2191, 4
        %v2196 = vsel %vm396, %v2190, %v2195
        %v2198 = vadd.f32 %v2177, %v2196
        %v2199 = vadd.f32 %v2178, %v2192
        %2200 = vrot.lane.b32.xlu0 %v2089, 111
        %v2201 = vpop.permute.xlu0 %2200
        %2202 = vrot.lane.b32.xlu0 %v2090, 111
        %v2203 = vpop.permute.xlu0 %2202
        %2204 = vrot.lane.b32.xlu0 %v2091, 111
        %v2205 = vpop.permute.xlu0 %2204
        %v2206 = vsel %vm495, %v2203, %v2205
        %v2207 = vsel %vm495, %v2201, %v2203
        %v2208 = vsel %vm495, %v2205, %v2201
        %s2209 = sld [smem:[#allocation7 + $0x1b]]
        %v2210 = vstv %s2209
        %v2211 = vmul.f32 %v2207, %v2210
        %v2212 = vmul.f32 %v2206, %v2210
        %v2213 = vmul.f32 %v2208, %v2210
        %v2216 = vrot.slane %v2212, 4
        %v2217 = vsel %vm396, %v2211, %v2216
        %v2219 = vadd.f32 %v2198, %v2217
        %v2220 = vadd.f32 %v2199, %v2213
        %2221 = vrot.lane.b32.xlu0 %v2089, 110
        %v2222 = vpop.permute.xlu0 %2221
        %2223 = vrot.lane.b32.xlu0 %v2090, 110
        %v2224 = vpop.permute.xlu0 %2223
        %2225 = vrot.lane.b32.xlu0 %v2091, 110
        %v2226 = vpop.permute.xlu0 %2225
        %v2227 = vsel %vm517, %v2224, %v2226
        %v2228 = vsel %vm517, %v2222, %v2224
        %v2229 = vsel %vm517, %v2226, %v2222
        %s2230 = sld [smem:[#allocation7 + $0x1f]]
        %v2231 = vstv %s2230
        %v2232 = vmul.f32 %v2228, %v2231
        %v2233 = vmul.f32 %v2227, %v2231
        %v2234 = vmul.f32 %v2229, %v2231
        %v2237 = vrot.slane %v2233, 4
        %v2238 = vsel %vm396, %v2232, %v2237
        %v2240 = vadd.f32 %v2219, %v2238
        %v2241 = vadd.f32 %v2220, %v2234
        %2242 = vrot.lane.b32.xlu0 %v2089, 109
        %v2243 = vpop.permute.xlu0 %2242
        %2244 = vrot.lane.b32.xlu0 %v2090, 109
        %v2245 = vpop.permute.xlu0 %2244
        %2246 = vrot.lane.b32.xlu0 %v2091, 109
        %v2247 = vpop.permute.xlu0 %2246
        %v2248 = vsel %vm539, %v2245, %v2247
        %v2249 = vsel %vm539, %v2243, %v2245
        %v2250 = vsel %vm539, %v2247, %v2243
        %s2251 = sld [smem:[#allocation7 + $0x23]]
        %v2252 = vstv %s2251
        %v2253 = vmul.f32 %v2249, %v2252
        %v2254 = vmul.f32 %v2248, %v2252
        %v2255 = vmul.f32 %v2250, %v2252
        %v2258 = vrot.slane %v2254, 4
        %v2259 = vsel %vm396, %v2253, %v2258
        %v2261 = vadd.f32 %v2240, %v2259
        %v2262 = vadd.f32 %v2241, %v2255
        %v2263 = vsub.f32 0.0, %v2261
        %v2264 = vsub.f32 0.0, %v2262
        %v2265 = vmul.f32 %v2263, 1.442695
        %v2266 = vpow.pop %v2265
        %v2267 = vmul.f32 %v2264, 1.442695
        %v2268 = vpow.pop %v2267
        %v2269 = vadd.f32 %v2266, 1.0
        %v2270 = vadd.f32 %v2268, 1.0
        %v2271 = vrcp.pop %v2269
        %v2272 = vmul.f32 %v2269, %v2271
        %v2273 = vsub.f32 1.0, %v2272
        %v2274 = vmul.f32 %v2271, %v2273
        %v2275 = vadd.f32 %v2271, %v2274
        %vm2276 = vweird.f32 %v2269
        %vm2277 = vweird.f32 %v2271
        %vm2278 = vmor %vm2276, %vm2277
        %v2279 = vsel %vm2278, %v2271, %v2275
        %v2280 = vand.u32 2147483647, %v2269
        %vm2281 = vcmp.eq.f32.partialorder %v2280, 8.507059e+37
        %v2282 = vand.u32 %v2269, 2147483648
        %v2283 = vor.u32 1.1754944e-38, %v2282
        %v2284 = vsel %vm2281, %v2283, %v2279
        %v2285 = vmul.f32 1.0, %v2284
        %v2286 = vrcp.pop %v2270
        %v2287 = vmul.f32 %v2270, %v2286
        %v2288 = vsub.f32 1.0, %v2287
        %v2289 = vmul.f32 %v2286, %v2288
        %v2290 = vadd.f32 %v2286, %v2289
        %vm2291 = vweird.f32 %v2270
        %vm2292 = vweird.f32 %v2286
        %vm2293 = vmor %vm2291, %vm2292
        %v2294 = vsel %vm2293, %v2286, %v2290
        %v2295 = vand.u32 2147483647, %v2270
        %vm2296 = vcmp.eq.f32.partialorder %v2295, 8.507059e+37
        %v2297 = vand.u32 %v2270, 2147483648
        %v2298 = vor.u32 1.1754944e-38, %v2297
        %v2299 = vsel %vm2296, %v2298, %v2294
        %v2300 = vmul.f32 1.0, %v2299
        %v2301 = vmul.f32 %v2261, %v2285
        %v2302 = vmul.f32 %v2262, %v2300
        %v2303 = vmul.f32 %v2035, %v2301
        %v2304 = vmul.f32 %v2036, %v2302
        %s2305 = sld [smem:[#allocation9]]
        %v2306 = vstv %s2305
        %v2307 = vmul.f32 %v821, %v2306
        %v2308 = vmul.f32 %v822, %v2306
        %s2309 = sld [smem:[#allocation9 + $0x4]]
        %v2310 = vstv %s2309
        %v2311 = vmul.f32 %v1315, %v2310
        %v2312 = vmul.f32 %v1316, %v2310
        %v2313 = vadd.f32 %v2307, %v2311
        %v2314 = vadd.f32 %v2308, %v2312
        %s2315 = sld [smem:[#allocation9 + $0x8]]
        %v2316 = vstv %s2315
        %v2317 = vmul.f32 %v1809, %v2316
        %v2318 = vmul.f32 %v1810, %v2316
        %v2319 = vadd.f32 %v2313, %v2317
        %v2320 = vadd.f32 %v2314, %v2318
        %s2321 = sld [smem:[#allocation9 + $0xc]]
        %v2322 = vstv %s2321
        %v2323 = vmul.f32 %v2303, %v2322
        %v2324 = vmul.f32 %v2304, %v2322
        %v2325 = vadd.f32 %v2319, %v2323
        %v2326 = vadd.f32 %v2320, %v2324
        %v2329 = vrot.slane %v2325, 3
        %v2330 = vrot.slane %v2326, 6
        %v2331 = vrot.slane %v2326, 1
        %vm2332 = vcmask 1040384
        %v2333 = vsel %vm2332, %v2325, %v2329
        %vm2334 = vcmask 1042434
        %v2335 = vsel %vm2334, %v2330, %v2331
        %vm2336 = vcmask 1041408
        %v2337 = vsel %vm2336, %v2333, %v2335
        %v2339 = vlaneseq
        %vm2340 = vcmp.ge.s32.totalorder %v2339, 0
        %vm2341 = vcmp.lt.s32.totalorder %v2339, 384
        %vm2342 = vmand %vm2340, %vm2341
        %2343 = vst.msk [vmem:[%s315] ss:$4 sm:$0x7] %vm2342, %v2337
        %s2344 = sld [smem:[#allocation9 + $0x1]]
        %v2345 = vstv %s2344
        %v2346 = vmul.f32 %v821, %v2345
        %v2347 = vmul.f32 %v822, %v2345
        %s2348 = sld [smem:[#allocation9 + $0x5]]
        %v2349 = vstv %s2348
        %v2350 = vmul.f32 %v1315, %v2349
        %v2351 = vmul.f32 %v1316, %v2349
        %v2352 = vadd.f32 %v2346, %v2350
        %v2353 = vadd.f32 %v2347, %v2351
        %s2354 = sld [smem:[#allocation9 + $0x9]]
        %v2355 = vstv %s2354
        %v2356 = vmul.f32 %v1809, %v2355
        %v2357 = vmul.f32 %v1810, %v2355
        %v2358 = vadd.f32 %v2352, %v2356
        %v2359 = vadd.f32 %v2353, %v2357
        %s2360 = sld [smem:[#allocation9 + $0xd]]
        %v2361 = vstv %s2360
        %v2362 = vmul.f32 %v2303, %v2361
        %v2363 = vmul.f32 %v2304, %v2361
        %v2364 = vadd.f32 %v2358, %v2362
        %v2365 = vadd.f32 %v2359, %v2363
        %v2368 = vrot.slane %v2364, 3
        %v2369 = vrot.slane %v2365, 6
        %v2370 = vrot.slane %v2365, 1
        %v2371 = vsel %vm2332, %v2364, %v2368
        %v2372 = vsel %vm2334, %v2369, %v2370
        %v2373 = vsel %vm2336, %v2371, %v2372
        %s2375 = scalar_lea.vmem %s315, 1
        %2376 = vst.msk [vmem:[%s2375] ss:$4 sm:$0x7] %vm2342, %v2373
        %s2377 = sld [smem:[#allocation9 + $0x2]]
        %v2378 = vstv %s2377
        %v2379 = vmul.f32 %v821, %v2378
        %v2380 = vmul.f32 %v822, %v2378
        %s2381 = sld [smem:[#allocation9 + $0x6]]
        %v2382 = vstv %s2381
        %v2383 = vmul.f32 %v1315, %v2382
        %v2384 = vmul.f32 %v1316, %v2382
        %v2385 = vadd.f32 %v2379, %v2383
        %v2386 = vadd.f32 %v2380, %v2384
        %s2387 = sld [smem:[#allocation9 + $0xa]]
        %v2388 = vstv %s2387
        %v2389 = vmul.f32 %v1809, %v2388
        %v2390 = vmul.f32 %v1810, %v2388
        %v2391 = vadd.f32 %v2385, %v2389
        %v2392 = vadd.f32 %v2386, %v2390
        %s2393 = sld [smem:[#allocation9 + $0xe]]
        %v2394 = vstv %s2393
        %v2395 = vmul.f32 %v2303, %v2394
        %v2396 = vmul.f32 %v2304, %v2394
        %v2397 = vadd.f32 %v2391, %v2395
        %v2398 = vadd.f32 %v2392, %v2396
        %v2401 = vrot.slane %v2397, 3
        %v2402 = vrot.slane %v2398, 6
        %v2403 = vrot.slane %v2398, 1
        %v2404 = vsel %vm2332, %v2397, %v2401
        %v2405 = vsel %vm2334, %v2402, %v2403
        %v2406 = vsel %vm2336, %v2404, %v2405
        %s2408 = scalar_lea.vmem %s315, 2
        %2409 = vst.msk [vmem:[%s2408] ss:$4 sm:$0x7] %vm2342, %v2406
        %s2410 = sld [smem:[#allocation9 + $0x3]]
        %v2411 = vstv %s2410
        %v2412 = vmul.f32 %v821, %v2411
        %v2413 = vmul.f32 %v822, %v2411
        %s2414 = sld [smem:[#allocation9 + $0x7]]
        %v2415 = vstv %s2414
        %v2416 = vmul.f32 %v1315, %v2415
        %v2417 = vmul.f32 %v1316, %v2415
        %v2418 = vadd.f32 %v2412, %v2416
        %v2419 = vadd.f32 %v2413, %v2417
        %s2420 = sld [smem:[#allocation9 + $0xb]]
        %v2421 = vstv %s2420
        %v2422 = vmul.f32 %v1809, %v2421
        %v2423 = vmul.f32 %v1810, %v2421
        %v2424 = vadd.f32 %v2418, %v2422
        %v2425 = vadd.f32 %v2419, %v2423
        %s2426 = sld [smem:[#allocation9 + $0xf]]
        %v2427 = vstv %s2426
        %v2428 = vmul.f32 %v2303, %v2427
        %v2429 = vmul.f32 %v2304, %v2427
        %v2430 = vadd.f32 %v2424, %v2428
        %v2431 = vadd.f32 %v2425, %v2429
        %v2434 = vrot.slane %v2430, 3
        %v2435 = vrot.slane %v2431, 6
        %v2436 = vrot.slane %v2431, 1
        %v2437 = vsel %vm2332, %v2430, %v2434
        %v2438 = vsel %vm2334, %v2435, %v2436
        %v2439 = vsel %vm2336, %v2437, %v2438
        %s2441 = scalar_lea.vmem %s315, 3
        %2442 = vst.msk [vmem:[%s2441] ss:$4 sm:$0x7] %vm2342, %v2439
        %p2443 = scmp.lt.s32.totalorder %s20, 1
        %s2444 = scalar_select %p2443, %s20, 1
        %s2445 = smul.addr %s2444, 3
        %s2446 = smul.addr %s2445, 4
        %s2447 = scalar_lea.vmem %s6, %s2446
        // Predicated region
        $region65: #{gffn_forward.1} parent=43 // pred_check
          %p2448 = pneg %p169
        $region66: #{gffn_forward.1} parent=43 // pred_check_branch
          %2450 = sbr.rel (%p2448) target = $region68
        $region67: #{gffn_forward.1} parent=43 // pred_region
          _
        $region68: #{gffn_forward.1} parent=43 // pred_fallthru
          _
      $region44: #{gffn_forward.1} parent=5 // pred_fallthru
        _
      %p2451 = scmp.le.s32.totalorder 2, %s15
      // Predicated region
      $region69: #{gffn_forward.1} parent=5 // pred_check
        %p2452 = pneg %p2451
      $region70: #{gffn_forward.1} parent=5 // pred_check_branch
        %2454 = sbr.rel (%p2452) target = $region72
      $region71: #{gffn_forward.1} parent=5 // pred_region
        %s2455 = ssub.s32 %s15, 2
        // Predicated region
        $region73: #{gffn_forward.1} parent=71 // pred_check
          %p2456 = pneg %p175
        $region74: #{gffn_forward.1} parent=71 // pred_check_branch
          %2458 = sbr.rel (%p2456) target = $region76
        $region75: #{gffn_forward.1} parent=71 // pred_region
          %p2459 = scmp.lt.s32.totalorder %s21, 1
          %s2460 = scalar_select %p2459, %s21, 1
          %s2461 = smul.addr %s2460, 3
          %s2462 = smul.addr %s2461, 4
          %s2463 = scalar_lea.vmem %s6, %s2462
        $region76: #{gffn_forward.1} parent=71 // pred_fallthru
          _
      $region72: #{gffn_forward.1} parent=5 // pred_fallthru
        _
    $region6: #{gffn_forward.1} parent=1 // loop_footer
      %s19 = sadd.s32 1, %s15
    $region7: #{gffn_forward.1} parent=1 // loop_footer_branch
      %14 = sbr.rel target = $region3
    $region8: #{gffn_forward.1} parent=1 // loop_exit
      _
    %2464 = vsyncpa [#allocation3], 1
    %s2465 = scalar_lea.sflag [#allocation3], 1
    %2466 = vsyncpa %s2465, 1
    %2467 = vsyncpa [#allocation5], 1
    %2468 = vsyncpa [#allocation8], 1

</llo_original>
